<compile_context>
chip_gen: v7x
topology: tpu7x:2x2x1
jax: 0.10.0
libtpu: 0.0.40
codegen_flags: <defaults>
</compile_context>

<pallas_src>
import functools

import jax
import jax.numpy as jnp
from jax.experimental import pallas as pl
from jax.experimental.pallas import tpu as pltpu


# ----------------------------------------------------------------------------- utils
def _round_up(x, m):
    return (x + m - 1) // m * m


def _pad2d(a, rows, cols):
    r, c = a.shape
    if r == rows and c == cols:
        return a
    return jnp.pad(a, ((0, rows - r), (0, cols - c)))


def _apply_act(y, act_type, negative_slope):
    # Static (trace-time) choice of activation; y is the f32 accumulator.
    if act_type == "relu":
        return jnp.maximum(y, 0.0)
    if act_type == "leaky_relu":
        return jnp.where(y >= 0.0, y, y * negative_slope)
    raise ValueError(act_type)


@functools.lru_cache(maxsize=1)
def _vmem_physical_bytes():
    """Physical VMEM per TensorCore, generation-aware with a conservative fallback."""
    try:
        info = pltpu.get_tpu_info()
        for attr in ("vmem_capacity_bytes", "vmem_bytes", "vmem_size_bytes"):
            v = getattr(info, attr, None)
            if v:
                return int(v)
    except Exception:
        pass
    try:
        kind = jax.devices()[0].device_kind.lower()
    except Exception:
        kind = ""
    if "v7" in kind:
        return 64 * 1024 * 1024
    if "v5" in kind or "v6" in kind:
        return 128 * 1024 * 1024
    return 64 * 1024 * 1024        # unknown chip: assume the smallest (v7x-like)


def _vmem_limit_bytes():
    # Leave headroom for compiler-internal scratch / spills.
    return int(0.8 * _vmem_physical_bytes())


def _fused_budget_bytes():
    # Budget for the fused (weights-resident) path admit check.
    return int(0.45 * _vmem_physical_bytes())


def _pick_tile(dim_p, target):
    """Largest multiple of 128 <= target that divides dim_p (dim_p % 128 == 0)."""
    t = max(128, (min(target, dim_p) // 128) * 128)
    while dim_p % t != 0:
        t -= 128
    return t


def _fused_tm(M):
    """M tile for the fused path; keep >=2 tiles so the 'parallel' grid can shard
    across TensorCores (v7x megacore) whenever the batch allows it."""
    tm = min(256, _round_up(max(M, 1), 16))
    Mp = _round_up(M, tm)
    while Mp // tm < 2 and tm > 16:
        tm = _round_up(max(tm // 2, 16), 16)
        Mp = _round_up(M, tm)
    return tm, Mp


# ------------------------------------------------------ one-time parameter prep
def prepare_mlp_params(params, acts, *, compute_dtype=jnp.bfloat16):
    """Pad weights/biases to lane-aligned shapes and cast ONCE (hoisted out of the
    per-forward path so weight HBM traffic is not doubled by pad/cast ops)."""
    dims = [params[0][0].shape[0]] + [w.shape[1] for (w, _) in params]
    dims_p = [_round_up(d, 128) for d in dims]
    weights_p, biases_p = [], []
    for li, (w, b) in enumerate(params):
        kp, np_ = dims_p[li], dims_p[li + 1]
        weights_p.append(_pad2d(w, kp, np_).astype(compute_dtype))
        biases_p.append(_pad2d(b.reshape(1, -1), 1, np_).astype(jnp.float32))
    return {
        "dims": dims,
        "dims_p": dims_p,
        "weights_p": weights_p,
        "biases_p": biases_p,
        "acts": tuple(bool(a) for a in acts),
        "compute_dtype": compute_dtype,
    }


def _fused_resident_bytes(prep, tm, out_itemsize, single_buffer):
    """VMEM footprint of the fused path: weights/biases (+buffering), x/out double
    buffers, and the f32 per-layer intermediate."""
    wmult = 1 if single_buffer else 2
    total = 0
    for w_p, b_p in zip(prep["weights_p"], prep["biases_p"]):
        total += wmult * (int(w_p.size) * w_p.dtype.itemsize
                          + int(b_p.size) * b_p.dtype.itemsize)
    d0, dn, dmax = prep["dims_p"][0], prep["dims_p"][-1], max(prep["dims_p"])
    cd = jnp.dtype(prep["compute_dtype"]).itemsize
    total += 2 * tm * d0 * cd                 # double-buffered x tile
    total += 2 * tm * dn * out_itemsize       # double-buffered out tile
    total += tm * dmax * (4 + cd)             # f32 intermediate + compute-dtype h
    return total


# -------------------------------------------------------- fused whole-MLP kernel
def _mlp_fused_kernel(*refs, n_layers, acts, act_type, negative_slope):
    # refs = (x_ref, w0, b0, w1, b1, ..., w_{n-1}, b_{n-1}, o_ref)
    x_ref = refs[0]
    o_ref = refs[1 + 2 * n_layers]
    h = x_ref[...]                                   # bf16 tile (tm, D0p)
    for i in range(n_layers):
        w_ref = refs[1 + 2 * i]
        b_ref = refs[2 + 2 * i]
        y = jnp.dot(h, w_ref[...], preferred_element_type=jnp.float32)
        y = y + b_ref[...].astype(jnp.float32)       # (1, Np) broadcasts over rows
        if acts[i]:
            y = _apply_act(y, act_type, negative_slope)
        if i == n_layers - 1:
            o_ref[...] = y.astype(o_ref.dtype)
        else:
            h = y.astype(h.dtype)                    # back to bf16 for next MXU pass


def mlp_fused_pallas(x, prep, *, act_type="relu", negative_slope=0.01,
                     out_dtype=None, single_buffer_weights=True):
    """Whole MLP in one pallas_call; weights VMEM-resident, activation on-chip."""
    M, Din = x.shape
    dims, dims_p = prep["dims"], prep["dims_p"]
    assert Din == dims[0]
    out_dtype = out_dtype or x.dtype
    compute_dtype = prep["compute_dtype"]
    n = len(prep["weights_p"])

    tm, Mp = _fused_tm(M)
    x_p = _pad2d(x, Mp, dims_p[0]).astype(compute_dtype)

    def resident_spec(shape):
        # Constant-index blocks: single-buffer so resident footprint is 1x, not 2x.
        if single_buffer_weights:
            return pl.BlockSpec(shape, lambda i: (0, 0),
                                pipeline_mode=pl.Buffered(1))
        return pl.BlockSpec(shape, lambda i: (0, 0))

    flat_inputs = [x_p]
    in_specs = [pl.BlockSpec((tm, dims_p[0]), lambda i: (i, 0))]
    for li in range(n):
        kp, np_ = dims_p[li], dims_p[li + 1]
        flat_inputs.append(prep["weights_p"][li])
        flat_inputs.append(prep["biases_p"][li])
        in_specs.append(resident_spec((kp, np_)))    # weight: resident
        in_specs.append(resident_spec((1, np_)))     # bias: resident

    flops = sum(2 * Mp * dims_p[i] * dims_p[i + 1] for i in range(n))
    bytes_accessed = sum(int(a.size) * a.dtype.itemsize for a in flat_inputs)
    bytes_accessed += Mp * dims_p[-1] * jnp.dtype(out_dtype).itemsize

    kernel = functools.partial(
        _mlp_fused_kernel, n_layers=n, acts=prep["acts"],
        act_type=act_type, negative_slope=negative_slope)

    y_p = pl.pallas_call(
        kernel,
        out_shape=jax.ShapeDtypeStruct((Mp, dims_p[-1]), out_dtype),
        grid=(Mp // tm,),
        in_specs=in_specs,
        out_specs=pl.BlockSpec((tm, dims_p[-1]), lambda i: (i, 0)),
        compiler_params=pltpu.CompilerParams(
            dimension_semantics=("parallel",),
            vmem_limit_bytes=_vmem_limit_bytes()),
        cost_estimate=pl.CostEstimate(
            flops=flops, transcendentals=0, bytes_accessed=bytes_accessed),
    )(*flat_inputs)
    return y_p[:M, :dims[-1]]


# --------------------------------------------- tiled per-layer linear (fallback)
def _linear_tiled_kernel(x_ref, w_ref, b_ref, o_ref, acc_ref, *,
                         apply_act, act_type, negative_slope):
    @pl.when(pl.program_id(2) == 0)
    def _():
        acc_ref[...] = jnp.zeros_like(acc_ref)

    acc_ref[...] += jnp.dot(x_ref[...], w_ref[...],
                            preferred_element_type=jnp.float32)

    @pl.when(pl.program_id(2) == pl.num_programs(2) - 1)
    def _():
        # Bias + activation only once, on the f32 accumulator (finalize branch).
        y = acc_ref[...] + b_ref[...].astype(jnp.float32)
        if apply_act:
            y = _apply_act(y, act_type, negative_slope)
        o_ref[...] = y.astype(o_ref.dtype)


def linear_tiled_pallas(x_p, w_p, b_p, *, apply_act, act_type="relu",
                        negative_slope=0.01, out_dtype, tm,
                        tn_target=512, tk_target=512):
    """y = act(x_p @ w_p + b_p) on pre-padded inputs; (M, N, K) grid, K last,
    f32 VMEM accumulator.  Large (up to 512) tiles amortize pipeline overhead and
    cut weight re-streaming."""
    Mp, Kp = x_p.shape
    Kp2, Np = w_p.shape
    assert Kp == Kp2 and Mp % tm == 0
    tn = _pick_tile(Np, tn_target)
    tk = _pick_tile(Kp, tk_target)

    flops = 2 * Mp * Kp * Np
    bytes_accessed = (int(x_p.size) * x_p.dtype.itemsize
                      + (Mp // tm) * int(w_p.size) * w_p.dtype.itemsize
                      + int(b_p.size) * b_p.dtype.itemsize
                      + Mp * Np * jnp.dtype(out_dtype).itemsize)

    kernel = functools.partial(_linear_tiled_kernel, apply_act=apply_act,
                               act_type=act_type, negative_slope=negative_slope)
    return pl.pallas_call(
        kernel,
        out_shape=jax.ShapeDtypeStruct((Mp, Np), out_dtype),
        grid_spec=pltpu.PrefetchScalarGridSpec(
            num_scalar_prefetch=0,
            grid=(Mp // tm, Np // tn, Kp // tk),
            in_specs=[
                pl.BlockSpec((tm, tk), lambda i, j, k: (i, k)),
                pl.BlockSpec((tk, tn), lambda i, j, k: (k, j)),
                pl.BlockSpec((1, tn), lambda i, j, k: (0, j)),
            ],
            out_specs=pl.BlockSpec((tm, tn), lambda i, j, k: (i, j)),
            scratch_shapes=[pltpu.VMEM((tm, tn), jnp.float32)],
        ),
        compiler_params=pltpu.CompilerParams(
            dimension_semantics=("parallel", "parallel", "arbitrary"),
            vmem_limit_bytes=_vmem_limit_bytes()),
        cost_estimate=pl.CostEstimate(
            flops=flops, transcendentals=0, bytes_accessed=bytes_accessed),
    )(x_p, w_p, b_p)


# ----------------------------------------------------------------- MLP frontend
def mlp_layer_config(layer_num, in_size, hidden_size, out_size):
    """Mirror the PyTorch MLP branching exactly: (fan_in, fan_out, has_activation)."""
    cfg = []
    for layer_id in range(layer_num):
        if layer_id == 0:
            cfg.append((in_size, hidden_size, True))
        elif layer_id < layer_num - 1:
            cfg.append((hidden_size, hidden_size, True))
        else:
            cfg.append((hidden_size, out_size, False))
    return cfg


def init_mlp_params(key, layer_num, in_size, hidden_size, out_size,
                    dtype=jnp.float32):
    """Init mimicking nn.Linear's uniform(-1/sqrt(fan_in), 1/sqrt(fan_in))."""
    cfg = mlp_layer_config(layer_num, in_size, hidden_size, out_size)
    params, acts = [], []
    for fan_in, fan_out, has_act in cfg:
        key, kw, kb = jax.random.split(key, 3)
        bound = 1.0 / (fan_in ** 0.5)
        w = jax.random.uniform(kw, (fan_in, fan_out), dtype, minval=-bound, maxval=bound)
        b = jax.random.uniform(kb, (fan_out,), dtype, minval=-bound, maxval=bound)
        params.append((w, b))
        acts.append(has_act)
    return params, acts


def mlp_forward(x, params=None, acts=None, *, prepared=None, act_type="relu",
                negative_slope=0.01, compute_dtype=jnp.bfloat16,
                force_tiled=False):
    """Forward pass of the MLP.  Dropout (eval mode) is identity."""
    prep = prepared if prepared is not None else prepare_mlp_params(
        params, acts, compute_dtype=compute_dtype)
    out_dtype = x.dtype
    out_itemsize = jnp.dtype(out_dtype).itemsize

    if not force_tiled:
        tm_f, _ = _fused_tm(x.shape[0])
        budget = _fused_budget_bytes()
        for single_buffer in (True, False):
            if _fused_resident_bytes(prep, tm_f, out_itemsize, single_buffer) < budget:
                try:
                    return mlp_fused_pallas(
                        x, prep, act_type=act_type, negative_slope=negative_slope,
                        out_dtype=out_dtype, single_buffer_weights=single_buffer)
                except Exception:
                    # e.g. pl.Buffered(1) unsupported by this jax version; try the
                    # double-buffered fused variant, then the tiled fallback.
                    continue

    # Fallback: per-layer tiled matmuls streaming weights from HBM.
    # Intermediate activations stay bf16 + padded (no f32 HBM round trips, no
    # per-layer re-pad/cast); only the final layer writes x.dtype.
    dims, dims_p = prep["dims"], prep["dims_p"]
    M = x.shape[0]
    tm = min(512, _round_up(M, 16))
    Mp = _round_up(M, tm)
    h = _pad2d(x, Mp, dims_p[0]).astype(prep["compute_dtype"])
    n = len(prep["weights_p"])
    for li in range(n):
        last = li == n - 1
        h = linear_tiled_pallas(
            h, prep["weights_p"][li], prep["biases_p"][li],
            apply_act=prep["acts"][li], act_type=act_type,
            negative_slope=negative_slope,
            out_dtype=(out_dtype if last else prep["compute_dtype"]),
            tm=tm)
    return h[:M, :dims[-1]]


def mlp_reference(x, params, acts, *, act_type="relu", negative_slope=0.01,
                  compute_dtype=jnp.bfloat16):
    """Pure-JAX reference with matching bf16-in / f32-accumulate semantics."""
    h = x.astype(compute_dtype)
    y = h.astype(jnp.float32)
    for (w, b), has_act in zip(params, acts):
        y = jnp.dot(h, w.astype(compute_dtype), preferred_element_type=jnp.float32)
        y = y + b.astype(jnp.float32)
        if has_act:
            y = _apply_act(y, act_type, negative_slope)
        h = y.astype(compute_dtype)
    return y.astype(x.dtype)


# ------------------------------------------------------------------------ demo
if __name__ == "__main__":
    key = jax.random.PRNGKey(0)

    # Small shapes consistent with the PyTorch module (MLP head).
    layer_num, in_size, hidden_size, out_size = 3, 16, 32, 8
    batch = 4

    kx, kp = jax.random.split(key)
    x = jax.random.normal(kx, (batch, in_size), jnp.float32)
    params, acts = init_mlp_params(kp, layer_num, in_size, hidden_size, out_size)
    prep = prepare_mlp_params(params, acts)           # one-time pad + cast

    # Fused path: one pallas_call for the whole MLP (weights VMEM-resident).
    y = jax.block_until_ready(mlp_forward(x, prepared=prep))
    y_ref = mlp_reference(x, params, acts)
    assert y.shape == (batch, out_size)
    assert jnp.allclose(y, y_ref, atol=1e-2, rtol=1e-2), "fused path mismatch"

    # Tiled fallback path, exercised at a larger MXU-friendly shape.
    batch2, in2, hid2, out2 = 256, 384, 512, 256
    kx2, kp2 = jax.random.split(jax.random.PRNGKey(1))
    x2 = jax.random.normal(kx2, (batch2, in2), jnp.float32)
    params2, acts2 = init_mlp_params(kp2, 3, in2, hid2, out2)
    prep2 = prepare_mlp_params(params2, acts2)
    y2 = jax.block_until_ready(mlp_forward(x2, prepared=prep2, force_tiled=True))
    y2_ref = mlp_reference(x2, params2, acts2)
    assert y2.shape == (batch2, out2)
    assert jnp.allclose(y2, y2_ref, atol=5e-2, rtol=5e-2), "tiled path mismatch"

    print("KERNEL_OK")
</pallas_src>

<mosaic_0001>
module attributes {stable_mosaic.version = 11 : i64} {
  func.func @_mlp_fused_kernel(%arg0: i32, %arg1: memref<16x128xbf16, #tpu.memory_space<vmem>>, %arg2: memref<128x128xbf16, #tpu.memory_space<vmem>>, %arg3: memref<1x128xf32, #tpu.memory_space<vmem>>, %arg4: memref<128x128xbf16, #tpu.memory_space<vmem>>, %arg5: memref<1x128xf32, #tpu.memory_space<vmem>>, %arg6: memref<128x128xbf16, #tpu.memory_space<vmem>>, %arg7: memref<1x128xf32, #tpu.memory_space<vmem>>, %arg8: memref<16x128xf32, #tpu.memory_space<vmem>>) attributes {dimension_semantics = [#tpu.dimension_semantics<parallel>], iteration_bounds = array<i64: 1>, scalar_prefetch = 0 : i64, scratch_operands = 0 : i64, tpu.core_type = #tpu.core_type<tc>, window_params = [{transform_indices = @transform_0, window_bounds = array<i64: 16, 128>}, {pipeline_mode = #tpu.pipeline_mode<synchronous>, transform_indices = @transform_1, window_bounds = array<i64: 128, 128>}, {pipeline_mode = #tpu.pipeline_mode<synchronous>, transform_indices = @transform_2, window_bounds = array<i64: 1, 128>}, {pipeline_mode = #tpu.pipeline_mode<synchronous>, transform_indices = @transform_3, window_bounds = array<i64: 128, 128>}, {pipeline_mode = #tpu.pipeline_mode<synchronous>, transform_indices = @transform_4, window_bounds = array<i64: 1, 128>}, {pipeline_mode = #tpu.pipeline_mode<synchronous>, transform_indices = @transform_5, window_bounds = array<i64: 128, 128>}, {pipeline_mode = #tpu.pipeline_mode<synchronous>, transform_indices = @transform_6, window_bounds = array<i64: 1, 128>}, {transform_indices = @transform_7, window_bounds = array<i64: 16, 128>}]} {
    %c0 = arith.constant 0 : index
    %c0_0 = arith.constant 0 : index
    %0 = vector.load %arg1[%c0, %c0_0] : memref<16x128xbf16, #tpu.memory_space<vmem>>, vector<16x128xbf16>
    %c0_1 = arith.constant 0 : index
    %c0_2 = arith.constant 0 : index
    %1 = vector.load %arg2[%c0_1, %c0_2] : memref<128x128xbf16, #tpu.memory_space<vmem>>, vector<128x128xbf16>
    %cst = arith.constant dense<0.000000e+00> : vector<16x128xf32>
    %2 = tpu.matmul %0, %1, %cst {dimension_numbers = #tpu.dot_dimension_numbers<[1], [0], [0], [1], [0, 0, 1, 1], [], []>} : vector<16x128xbf16>, vector<128x128xbf16>, vector<16x128xf32> -> vector<16x128xf32>
    %c0_3 = arith.constant 0 : index
    %c0_4 = arith.constant 0 : index
    %3 = vector.load %arg3[%c0_3, %c0_4] : memref<1x128xf32, #tpu.memory_space<vmem>>, vector<1x128xf32>
    %4 = vector.broadcast %3 : vector<1x128xf32> to vector<16x128xf32>
    %5 = arith.addf %2, %4 : vector<16x128xf32>
    %cst_5 = arith.constant 0.000000e+00 : f32
    %6 = vector.broadcast %cst_5 : f32 to vector<16x128xf32>
    %7 = arith.maximumf %5, %6 : vector<16x128xf32>
    %8 = arith.truncf %7 : vector<16x128xf32> to vector<16x128xbf16>
    %c0_6 = arith.constant 0 : index
    %c0_7 = arith.constant 0 : index
    %9 = vector.load %arg4[%c0_6, %c0_7] : memref<128x128xbf16, #tpu.memory_space<vmem>>, vector<128x128xbf16>
    %cst_8 = arith.constant dense<0.000000e+00> : vector<16x128xf32>
    %10 = tpu.matmul %8, %9, %cst_8 {dimension_numbers = #tpu.dot_dimension_numbers<[1], [0], [0], [1], [0, 0, 1, 1], [], []>} : vector<16x128xbf16>, vector<128x128xbf16>, vector<16x128xf32> -> vector<16x128xf32>
    %c0_9 = arith.constant 0 : index
    %c0_10 = arith.constant 0 : index
    %11 = vector.load %arg5[%c0_9, %c0_10] : memref<1x128xf32, #tpu.memory_space<vmem>>, vector<1x128xf32>
    %12 = vector.broadcast %11 : vector<1x128xf32> to vector<16x128xf32>
    %13 = arith.addf %10, %12 : vector<16x128xf32>
    %cst_11 = arith.constant 0.000000e+00 : f32
    %14 = vector.broadcast %cst_11 : f32 to vector<16x128xf32>
    %15 = arith.maximumf %13, %14 : vector<16x128xf32>
    %16 = arith.truncf %15 : vector<16x128xf32> to vector<16x128xbf16>
    %c0_12 = arith.constant 0 : index
    %c0_13 = arith.constant 0 : index
    %17 = vector.load %arg6[%c0_12, %c0_13] : memref<128x128xbf16, #tpu.memory_space<vmem>>, vector<128x128xbf16>
    %cst_14 = arith.constant dense<0.000000e+00> : vector<16x128xf32>
    %18 = tpu.matmul %16, %17, %cst_14 {dimension_numbers = #tpu.dot_dimension_numbers<[1], [0], [0], [1], [0, 0, 1, 1], [], []>} : vector<16x128xbf16>, vector<128x128xbf16>, vector<16x128xf32> -> vector<16x128xf32>
    %c0_15 = arith.constant 0 : index
    %c0_16 = arith.constant 0 : index
    %19 = vector.load %arg7[%c0_15, %c0_16] : memref<1x128xf32, #tpu.memory_space<vmem>>, vector<1x128xf32>
    %20 = vector.broadcast %19 : vector<1x128xf32> to vector<16x128xf32>
    %21 = arith.addf %18, %20 : vector<16x128xf32>
    %c0_17 = arith.constant 0 : index
    %c0_18 = arith.constant 0 : index
    %22 = vector.load %arg8[%c0_17, %c0_18] : memref<16x128xf32, #tpu.memory_space<vmem>>, vector<16x128xf32>
    tpu.vector_store %arg8[%c0_17, %c0_18], %21 {strides = array<i32>} : memref<16x128xf32, #tpu.memory_space<vmem>>, vector<16x128xf32>,
    return
  }
  func.func @transform_0(%arg0: i32) -> (i32, i32) {
    %c0_i32 = arith.constant 0 : i32
    %c0_i32_0 = arith.constant 0 : i32
    return %arg0, %c0_i32 : i32, i32
  }
  func.func @transform_1(%arg0: i32) -> (i32, i32) {
    %c0_i32 = arith.constant 0 : i32
    %c0_i32_0 = arith.constant 0 : i32
    %c0_i32_1 = arith.constant 0 : i32
    return %c0_i32, %c0_i32_0 : i32, i32
  }
  func.func @transform_2(%arg0: i32) -> (i32, i32) {
    %c0_i32 = arith.constant 0 : i32
    %c0_i32_0 = arith.constant 0 : i32
    %c0_i32_1 = arith.constant 0 : i32
    return %c0_i32, %c0_i32_0 : i32, i32
  }
  func.func @transform_3(%arg0: i32) -> (i32, i32) {
    %c0_i32 = arith.constant 0 : i32
    %c0_i32_0 = arith.constant 0 : i32
    %c0_i32_1 = arith.constant 0 : i32
    return %c0_i32, %c0_i32_0 : i32, i32
  }
  func.func @transform_4(%arg0: i32) -> (i32, i32) {
    %c0_i32 = arith.constant 0 : i32
    %c0_i32_0 = arith.constant 0 : i32
    %c0_i32_1 = arith.constant 0 : i32
    return %c0_i32, %c0_i32_0 : i32, i32
  }
  func.func @transform_5(%arg0: i32) -> (i32, i32) {
    %c0_i32 = arith.constant 0 : i32
    %c0_i32_0 = arith.constant 0 : i32
    %c0_i32_1 = arith.constant 0 : i32
    return %c0_i32, %c0_i32_0 : i32, i32
  }
  func.func @transform_6(%arg0: i32) -> (i32, i32) {
    %c0_i32 = arith.constant 0 : i32
    %c0_i32_0 = arith.constant 0 : i32
    %c0_i32_1 = arith.constant 0 : i32
    return %c0_i32, %c0_i32_0 : i32, i32
  }
  func.func @transform_7(%arg0: i32) -> (i32, i32) {
    %c0_i32 = arith.constant 0 : i32
    %c0_i32_0 = arith.constant 0 : i32
    return %arg0, %c0_i32 : i32, i32
  }
}

module attributes {stable_mosaic.version = 11 : i64} {
  func.func @_mlp_fused_kernel(%arg0: i32, %arg1: memref<16x128xbf16, #tpu.memory_space<vmem>>, %arg2: memref<128x128xbf16, #tpu.memory_space<vmem>>, %arg3: memref<1x128xf32, #tpu.memory_space<vmem>>, %arg4: memref<128x128xbf16, #tpu.memory_space<vmem>>, %arg5: memref<1x128xf32, #tpu.memory_space<vmem>>, %arg6: memref<128x128xbf16, #tpu.memory_space<vmem>>, %arg7: memref<1x128xf32, #tpu.memory_space<vmem>>, %arg8: memref<16x128xf32, #tpu.memory_space<vmem>>) attributes {dimension_semantics = [#tpu.dimension_semantics<parallel>], iteration_bounds = array<i64: 1>, scalar_prefetch = 0 : i64, scratch_operands = 0 : i64, tpu.core_type = #tpu.core_type<tc>, window_params = [{transform_indices = @transform_0, window_bounds = array<i64: 16, 128>}, {pipeline_mode = #tpu.pipeline_mode<synchronous>, transform_indices = @transform_1, window_bounds = array<i64: 128, 128>}, {pipeline_mode = #tpu.pipeline_mode<synchronous>, transform_indices = @transform_2, window_bounds = array<i64: 1, 128>}, {pipeline_mode = #tpu.pipeline_mode<synchronous>, transform_indices = @transform_3, window_bounds = array<i64: 128, 128>}, {pipeline_mode = #tpu.pipeline_mode<synchronous>, transform_indices = @transform_4, window_bounds = array<i64: 1, 128>}, {pipeline_mode = #tpu.pipeline_mode<synchronous>, transform_indices = @transform_5, window_bounds = array<i64: 128, 128>}, {pipeline_mode = #tpu.pipeline_mode<synchronous>, transform_indices = @transform_6, window_bounds = array<i64: 1, 128>}, {transform_indices = @transform_7, window_bounds = array<i64: 16, 128>}]} {
    %c0 = arith.constant 0 : index
    %c0_0 = arith.constant 0 : index
    %0 = vector.load %arg1[%c0, %c0_0] : memref<16x128xbf16, #tpu.memory_space<vmem>>, vector<16x128xbf16>
    %c0_1 = arith.constant 0 : index
    %c0_2 = arith.constant 0 : index
    %1 = vector.load %arg2[%c0_1, %c0_2] : memref<128x128xbf16, #tpu.memory_space<vmem>>, vector<128x128xbf16>
    %cst = arith.constant dense<0.000000e+00> : vector<16x128xf32>
    %2 = tpu.matmul %0, %1, %cst {dimension_numbers = #tpu.dot_dimension_numbers<[1], [0], [0], [1], [0, 0, 1, 1], [], []>} : vector<16x128xbf16>, vector<128x128xbf16>, vector<16x128xf32> -> vector<16x128xf32>
    %c0_3 = arith.constant 0 : index
    %c0_4 = arith.constant 0 : index
    %3 = vector.load %arg3[%c0_3, %c0_4] : memref<1x128xf32, #tpu.memory_space<vmem>>, vector<1x128xf32>
    %4 = vector.broadcast %3 : vector<1x128xf32> to vector<16x128xf32>
    %5 = arith.addf %2, %4 : vector<16x128xf32>
    %cst_5 = arith.constant 0.000000e+00 : f32
    %6 = vector.broadcast %cst_5 : f32 to vector<16x128xf32>
    %7 = arith.maximumf %5, %6 : vector<16x128xf32>
    %8 = arith.truncf %7 : vector<16x128xf32> to vector<16x128xbf16>
    %c0_6 = arith.constant 0 : index
    %c0_7 = arith.constant 0 : index
    %9 = vector.load %arg4[%c0_6, %c0_7] : memref<128x128xbf16, #tpu.memory_space<vmem>>, vector<128x128xbf16>
    %cst_8 = arith.constant dense<0.000000e+00> : vector<16x128xf32>
    %10 = tpu.matmul %8, %9, %cst_8 {dimension_numbers = #tpu.dot_dimension_numbers<[1], [0], [0], [1], [0, 0, 1, 1], [], []>} : vector<16x128xbf16>, vector<128x128xbf16>, vector<16x128xf32> -> vector<16x128xf32>
    %c0_9 = arith.constant 0 : index
    %c0_10 = arith.constant 0 : index
    %11 = vector.load %arg5[%c0_9, %c0_10] : memref<1x128xf32, #tpu.memory_space<vmem>>, vector<1x128xf32>
    %12 = vector.broadcast %11 : vector<1x128xf32> to vector<16x128xf32>
    %13 = arith.addf %10, %12 : vector<16x128xf32>
    %cst_11 = arith.constant 0.000000e+00 : f32
    %14 = vector.broadcast %cst_11 : f32 to vector<16x128xf32>
    %15 = arith.maximumf %13, %14 : vector<16x128xf32>
    %16 = arith.truncf %15 : vector<16x128xf32> to vector<16x128xbf16>
    %c0_12 = arith.constant 0 : index
    %c0_13 = arith.constant 0 : index
    %17 = vector.load %arg6[%c0_12, %c0_13] : memref<128x128xbf16, #tpu.memory_space<vmem>>, vector<128x128xbf16>
    %cst_14 = arith.constant dense<0.000000e+00> : vector<16x128xf32>
    %18 = tpu.matmul %16, %17, %cst_14 {dimension_numbers = #tpu.dot_dimension_numbers<[1], [0], [0], [1], [0, 0, 1, 1], [], []>} : vector<16x128xbf16>, vector<128x128xbf16>, vector<16x128xf32> -> vector<16x128xf32>
    %c0_15 = arith.constant 0 : index
    %c0_16 = arith.constant 0 : index
    %19 = vector.load %arg7[%c0_15, %c0_16] : memref<1x128xf32, #tpu.memory_space<vmem>>, vector<1x128xf32>
    %20 = vector.broadcast %19 : vector<1x128xf32> to vector<16x128xf32>
    %21 = arith.addf %18, %20 : vector<16x128xf32>
    %c0_17 = arith.constant 0 : index
    %c0_18 = arith.constant 0 : index
    %22 = vector.load %arg8[%c0_17, %c0_18] : memref<16x128xf32, #tpu.memory_space<vmem>>, vector<16x128xf32>
    tpu.vector_store %arg8[%c0_17, %c0_18], %21 {strides = array<i32>} : memref<16x128xf32, #tpu.memory_space<vmem>>, vector<16x128xf32>,
    return
  }
  func.func @transform_0(%arg0: i32) -> (i32, i32) {
    %c0_i32 = arith.constant 0 : i32
    %c0_i32_0 = arith.constant 0 : i32
    return %arg0, %c0_i32 : i32, i32
  }
  func.func @transform_1(%arg0: i32) -> (i32, i32) {
    %c0_i32 = arith.constant 0 : i32
    %c0_i32_0 = arith.constant 0 : i32
    %c0_i32_1 = arith.constant 0 : i32
    return %c0_i32, %c0_i32_0 : i32, i32
  }
  func.func @transform_2(%arg0: i32) -> (i32, i32) {
    %c0_i32 = arith.constant 0 : i32
    %c0_i32_0 = arith.constant 0 : i32
    %c0_i32_1 = arith.constant 0 : i32
    return %c0_i32, %c0_i32_0 : i32, i32
  }
  func.func @transform_3(%arg0: i32) -> (i32, i32) {
    %c0_i32 = arith.constant 0 : i32
    %c0_i32_0 = arith.constant 0 : i32
    %c0_i32_1 = arith.constant 0 : i32
    return %c0_i32, %c0_i32_0 : i32, i32
  }
  func.func @transform_4(%arg0: i32) -> (i32, i32) {
    %c0_i32 = arith.constant 0 : i32
    %c0_i32_0 = arith.constant 0 : i32
    %c0_i32_1 = arith.constant 0 : i32
    return %c0_i32, %c0_i32_0 : i32, i32
  }
  func.func @transform_5(%arg0: i32) -> (i32, i32) {
    %c0_i32 = arith.constant 0 : i32
    %c0_i32_0 = arith.constant 0 : i32
    %c0_i32_1 = arith.constant 0 : i32
    return %c0_i32, %c0_i32_0 : i32, i32
  }
  func.func @transform_6(%arg0: i32) -> (i32, i32) {
    %c0_i32 = arith.constant 0 : i32
    %c0_i32_0 = arith.constant 0 : i32
    %c0_i32_1 = arith.constant 0 : i32
    return %c0_i32, %c0_i32_0 : i32, i32
  }
  func.func @transform_7(%arg0: i32) -> (i32, i32) {
    %c0_i32 = arith.constant 0 : i32
    %c0_i32_0 = arith.constant 0 : i32
    return %arg0, %c0_i32 : i32, i32
  }
}

module attributes {stable_mosaic.version = 11 : i64} {
  func.func @_linear_tiled_kernel(%arg0: i32, %arg1: i32, %arg2: i32, %arg3: memref<16x128xbf16, #tpu.memory_space<vmem>>, %arg4: memref<128x128xbf16, #tpu.memory_space<vmem>>, %arg5: memref<1x128xf32, #tpu.memory_space<vmem>>, %arg6: memref<16x128xbf16, #tpu.memory_space<vmem>>, %arg7: memref<16x128xf32, #tpu.memory_space<vmem>>) attributes {dimension_semantics = [#tpu.dimension_semantics<parallel>, #tpu.dimension_semantics<parallel>, #tpu.dimension_semantics<arbitrary>], iteration_bounds = array<i64: 1, 1, 1>, scalar_prefetch = 0 : i64, scratch_operands = 1 : i64, tpu.core_type = #tpu.core_type<tc>, window_params = [{transform_indices = @transform_0, window_bounds = array<i64: 16, 128>}, {transform_indices = @transform_1, window_bounds = array<i64: 128, 128>}, {transform_indices = @transform_2, window_bounds = array<i64: 1, 128>}, {transform_indices = @transform_3, window_bounds = array<i64: 16, 128>}]} {
    %c0_i32 = arith.constant 0 : i32
    %0 = arith.cmpi eq, %arg2, %c0_i32 : i32
    %1 = arith.extui %0 : i1 to i32
    %c0_i32_0 = arith.constant 0 : i32
    %2 = arith.cmpi ne, %1, %c0_i32_0 : i32
    scf.if %2 {
      %cst_10 = arith.constant 0.000000e+00 : f32
      %12 = vector.broadcast %cst_10 : f32 to vector<16x128xf32>
      %c0_11 = arith.constant 0 : index
      %c0_12 = arith.constant 0 : index
      %13 = vector.load %arg7[%c0_11, %c0_12] : memref<16x128xf32, #tpu.memory_space<vmem>>, vector<16x128xf32>
      tpu.vector_store %arg7[%c0_11, %c0_12], %12 {strides = array<i32>} : memref<16x128xf32, #tpu.memory_space<vmem>>, vector<16x128xf32>,
    } else {
    }
    %c0 = arith.constant 0 : index
    %c0_1 = arith.constant 0 : index
    %3 = vector.load %arg7[%c0, %c0_1] : memref<16x128xf32, #tpu.memory_space<vmem>>, vector<16x128xf32>
    %c0_2 = arith.constant 0 : index
    %c0_3 = arith.constant 0 : index
    %4 = vector.load %arg3[%c0_2, %c0_3] : memref<16x128xbf16, #tpu.memory_space<vmem>>, vector<16x128xbf16>
    %c0_4 = arith.constant 0 : index
    %c0_5 = arith.constant 0 : index
    %5 = vector.load %arg4[%c0_4, %c0_5] : memref<128x128xbf16, #tpu.memory_space<vmem>>, vector<128x128xbf16>
    %cst = arith.constant dense<0.000000e+00> : vector<16x128xf32>
    %6 = tpu.matmul %4, %5, %cst {dimension_numbers = #tpu.dot_dimension_numbers<[1], [0], [0], [1], [0, 0, 1, 1], [], []>} : vector<16x128xbf16>, vector<128x128xbf16>, vector<16x128xf32> -> vector<16x128xf32>
    %7 = arith.addf %3, %6 : vector<16x128xf32>
    %c0_6 = arith.constant 0 : index
    %c0_7 = arith.constant 0 : index
    %8 = vector.load %arg7[%c0_6, %c0_7] : memref<16x128xf32, #tpu.memory_space<vmem>>, vector<16x128xf32>
    tpu.vector_store %arg7[%c0_6, %c0_7], %7 {strides = array<i32>} : memref<16x128xf32, #tpu.memory_space<vmem>>, vector<16x128xf32>,
    %c0_i32_8 = arith.constant 0 : i32
    %9 = arith.cmpi eq, %arg2, %c0_i32_8 : i32
    %10 = arith.extui %9 : i1 to i32
    %c0_i32_9 = arith.constant 0 : i32
    %11 = arith.cmpi ne, %10, %c0_i32_9 : i32
    scf.if %11 {
      %c0_10 = arith.constant 0 : index
      %c0_11 = arith.constant 0 : index
      %12 = vector.load %arg7[%c0_10, %c0_11] : memref<16x128xf32, #tpu.memory_space<vmem>>, vector<16x128xf32>
      %c0_12 = arith.constant 0 : index
      %c0_13 = arith.constant 0 : index
      %13 = vector.load %arg5[%c0_12, %c0_13] : memref<1x128xf32, #tpu.memory_space<vmem>>, vector<1x128xf32>
      %14 = vector.broadcast %13 : vector<1x128xf32> to vector<16x128xf32>
      %15 = arith.addf %12, %14 : vector<16x128xf32>
      %cst_14 = arith.constant 0.000000e+00 : f32
      %16 = vector.broadcast %cst_14 : f32 to vector<16x128xf32>
      %17 = arith.maximumf %15, %16 : vector<16x128xf32>
      %18 = arith.truncf %17 : vector<16x128xf32> to vector<16x128xbf16>
      %c0_15 = arith.constant 0 : index
      %c0_16 = arith.constant 0 : index
      %19 = vector.load %arg6[%c0_15, %c0_16] : memref<16x128xbf16, #tpu.memory_space<vmem>>, vector<16x128xbf16>
      tpu.vector_store %arg6[%c0_15, %c0_16], %18 {strides = array<i32>} : memref<16x128xbf16, #tpu.memory_space<vmem>>, vector<16x128xbf16>,
    } else {
    }
    return
  }
  func.func @transform_0(%arg0: i32, %arg1: i32, %arg2: i32) -> (i32, i32) {
    %c0_i32 = arith.constant 0 : i32
    return %arg0, %arg2 : i32, i32
  }
  func.func @transform_1(%arg0: i32, %arg1: i32, %arg2: i32) -> (i32, i32) {
    %c0_i32 = arith.constant 0 : i32
    return %arg2, %arg1 : i32, i32
  }
  func.func @transform_2(%arg0: i32, %arg1: i32, %arg2: i32) -> (i32, i32) {
    %c0_i32 = arith.constant 0 : i32
    %c0_i32_0 = arith.constant 0 : i32
    return %c0_i32, %arg1 : i32, i32
  }
  func.func @transform_3(%arg0: i32, %arg1: i32, %arg2: i32) -> (i32, i32) {
    %c0_i32 = arith.constant 0 : i32
    return %arg0, %arg1 : i32, i32
  }
}

</mosaic_0001>

<llo_original>
// kernel: tpu_custom_call.1
$region0: #{tpu_custom_call.1}
  #allocation0 [shape = 'u32[]', space=smem, size = 0x4, offset = 0x4, fixed_abs, tag = 'smem constant byte address 0x4 - core index']
  #allocation1 [shape = 'u32[144,128]{1,0:T(1,128)}', space=vmem, size = 0x12000, scoped, tag = 'internal scratch']
  %s0 = inlined_call_operand.hbm [shape: bf16[16,128], index: 0, kind: input, shape index: {}]
  %s1 = inlined_call_operand.hbm [shape: bf16[128,128], index: 1, kind: input, shape index: {}]
  %s2 = inlined_call_operand.vmem [shape: f32[1,128], index: 2, kind: input, shape index: {}]
  %s3 = inlined_call_operand.hbm [shape: bf16[128,128], index: 3, kind: input, shape index: {}]
  %s4 = inlined_call_operand.vmem [shape: f32[1,128], index: 4, kind: input, shape index: {}]
  %s5 = inlined_call_operand.hbm [shape: bf16[128,128], index: 5, kind: input, shape index: {}]
  %s6 = inlined_call_operand.vmem [shape: f32[1,128], index: 6, kind: input, shape index: {}]
  %s7 = inlined_call_operand.hbm [shape: f32[16,128], index: 7, kind: output, shape index: {}]
  %s8 = sld [smem:[#allocation0]]
  $region54: #{tpu_custom_call.1} parent=0
    _
  %s10 = ssub.s32 1, %s8
  %s11 = scalar_select 0, %s10, %s8
  $region1: #{tpu_custom_call.1} parent=0
    #allocation2 [shape = 'u8[4096]{0}', space=vmem, size = 0x1000, scoped, tag = 'input window, operand 0, single buffered']
    #allocation3 [shape = 's32[1]{0}', space=sflag, size = 0x4, scoped, tag = 'scoped memory for tpu_custom_call.1']
    #allocation4 [shape = 's32[1]{0}', space=sflag, size = 0x4, scoped, tag = 'scoped memory for tpu_custom_call.1']
    #allocation5 [shape = 'u8[32768]{0}', space=vmem, size = 0x8000, scoped, tag = 'input window, operand 1, single buffered']
    #allocation6 [shape = 's32[1]{0}', space=sflag, size = 0x4, scoped, tag = 'scoped memory for tpu_custom_call.1']
    #allocation7 [shape = 'u8[32768]{0}', space=vmem, size = 0x8000, scoped, tag = 'input window, operand 3, single buffered']
    #allocation8 [shape = 'u8[32768]{0}', space=vmem, size = 0x8000, scoped, tag = 'input window, operand 5, single buffered']
    #allocation9 [shape = 's32[1]{0}', space=sflag, size = 0x4, scoped, tag = 'scoped memory for tpu_custom_call.1']
    #allocation10 [shape = 'u8[8192]{0}', space=vmem, size = 0x2000, scoped, tag = 'output window, operand 0, single buffered']
    %12 = vsyncpa [#allocation3], 0
    %13 = vsyncpa [#allocation6], 0
    %14 = vsyncpa [#allocation9], 0
    %15 = vsyncpa [#allocation4], 0
    // Predicated region
    $region2: #{tpu_custom_call.1} parent=1 // pred_check
      _
    $region3: #{tpu_custom_call.1} parent=1 // pred_check_branch
      %17 = sbr.rel (0) target = $region5
    $region4: #{tpu_custom_call.1} parent=1 // pred_region
      %s19 = ssub.s32 128, 128
      %20 = vsyncadd [#allocation3], %s19
      %s21 = sshll.u32 [#allocation2], 4
      %s22 = int_to_ptr.vmem [resolvable:$true] %s21
      %27 = dma.hbm_to_vmem [thread:$0]  %s0, 128, %s22, [#allocation3], 64, 64, 4
    $region5: #{tpu_custom_call.1} parent=1 // pred_fallthru
      _
    // Predicated region
    $region6: #{tpu_custom_call.1} parent=1 // pred_check
      _
    $region7: #{tpu_custom_call.1} parent=1 // pred_check_branch
      %29 = sbr.rel (0) target = $region9
    $region8: #{tpu_custom_call.1} parent=1 // pred_region
      %s31 = ssub.s32 1024, 1024
      %32 = vsyncadd [#allocation6], %s31
      %s33 = sshll.u32 [#allocation5], 4
      %s34 = int_to_ptr.vmem [resolvable:$true] %s33
      %39 = dma.hbm_to_vmem [thread:$0]  %s1, 1024, %s34, [#allocation6], 64, 64, 4
    $region9: #{tpu_custom_call.1} parent=1 // pred_fallthru
      _
    // Predicated region
    $region10: #{tpu_custom_call.1} parent=1 // pred_check
      _
    $region11: #{tpu_custom_call.1} parent=1 // pred_check_branch
      %41 = sbr.rel (0) target = $region13
    $region12: #{tpu_custom_call.1} parent=1 // pred_region
      _
    $region13: #{tpu_custom_call.1} parent=1 // pred_fallthru
      _
    // Predicated region
    $region14: #{tpu_custom_call.1} parent=1 // pred_check
      _
    $region15: #{tpu_custom_call.1} parent=1 // pred_check_branch
      %43 = sbr.rel (0) target = $region17
    $region16: #{tpu_custom_call.1} parent=1 // pred_region
      %s45 = ssub.s32 1024, 1024
      %46 = vsyncadd [#allocation6], %s45
      %s47 = sshll.u32 [#allocation7], 4
      %s48 = int_to_ptr.vmem [resolvable:$true] %s47
      %53 = dma.hbm_to_vmem [thread:$0]  %s3, 1024, %s48, [#allocation6], 64, 64, 4
    $region17: #{tpu_custom_call.1} parent=1 // pred_fallthru
      _
    // Predicated region
    $region18: #{tpu_custom_call.1} parent=1 // pred_check
      _
    $region19: #{tpu_custom_call.1} parent=1 // pred_check_branch
      %55 = sbr.rel (0) target = $region21
    $region20: #{tpu_custom_call.1} parent=1 // pred_region
      _
    $region21: #{tpu_custom_call.1} parent=1 // pred_fallthru
      _
    // Predicated region
    $region22: #{tpu_custom_call.1} parent=1 // pred_check
      _
    $region23: #{tpu_custom_call.1} parent=1 // pred_check_branch
      %57 = sbr.rel (0) target = $region25
    $region24: #{tpu_custom_call.1} parent=1 // pred_region
      %s59 = ssub.s32 1024, 1024
      %60 = vsyncadd [#allocation9], %s59
      %s61 = sshll.u32 [#allocation8], 4
      %s62 = int_to_ptr.vmem [resolvable:$true] %s61
      %67 = dma.hbm_to_vmem [thread:$0]  %s5, 1024, %s62, [#allocation9], 64, 64, 4
    $region25: #{tpu_custom_call.1} parent=1 // pred_fallthru
      _
    // Predicated region
    $region26: #{tpu_custom_call.1} parent=1 // pred_check
      _
    $region27: #{tpu_custom_call.1} parent=1 // pred_check_branch
      %69 = sbr.rel (0) target = $region29
    $region28: #{tpu_custom_call.1} parent=1 // pred_region
      _
    $region29: #{tpu_custom_call.1} parent=1 // pred_fallthru
      _
    // Predicated region
    $region30: #{tpu_custom_call.1} parent=1 // pred_check
      _
    $region31: #{tpu_custom_call.1} parent=1 // pred_check_branch
      %71 = sbr.rel (0) target = $region33
    $region32: #{tpu_custom_call.1} parent=1 // pred_region
      %72 = dma.done [#allocation3], 128
    $region33: #{tpu_custom_call.1} parent=1 // pred_fallthru
      _
    // Predicated region
    $region34: #{tpu_custom_call.1} parent=1 // pred_check
      _
    $region35: #{tpu_custom_call.1} parent=1 // pred_check_branch
      %74 = sbr.rel (0) target = $region37
    $region36: #{tpu_custom_call.1} parent=1 // pred_region
      %75 = dma.done [#allocation6], 1024
    $region37: #{tpu_custom_call.1} parent=1 // pred_fallthru
      _
    // Predicated region
    $region38: #{tpu_custom_call.1} parent=1 // pred_check
      _
    $region39: #{tpu_custom_call.1} parent=1 // pred_check_branch
      %77 = sbr.rel (0) target = $region41
    $region40: #{tpu_custom_call.1} parent=1 // pred_region
      %78 = dma.done [#allocation6], 1024
    $region41: #{tpu_custom_call.1} parent=1 // pred_fallthru
      _
    // Predicated region
    $region42: #{tpu_custom_call.1} parent=1 // pred_check
      _
    $region43: #{tpu_custom_call.1} parent=1 // pred_check_branch
      %80 = sbr.rel (0) target = $region45
    $region44: #{tpu_custom_call.1} parent=1 // pred_region
      %81 = dma.done [#allocation9], 1024
    $region45: #{tpu_custom_call.1} parent=1 // pred_fallthru
      _
    %v83 = vld [vmem:[#allocation2] sm:$0xf]
    %v84 = vld [vmem:[#allocation2 + $0x4] sm:$0xf]
    %v85 = vld [vmem:[#allocation5] sm:$0xf]
    %v86 = vld [vmem:[#allocation5 + $0x4] sm:$0xf]
    %v87 = vld [vmem:[#allocation5 + $0x8] sm:$0xf]
    %v88 = vld [vmem:[#allocation5 + $0xc] sm:$0xf]
    %v89 = vld [vmem:[#allocation5 + $0x10] sm:$0xf]
    %v90 = vld [vmem:[#allocation5 + $0x14] sm:$0xf]
    %v91 = vld [vmem:[#allocation5 + $0x18] sm:$0xf]
    %v92 = vld [vmem:[#allocation5 + $0x1c] sm:$0xf]
    %v93 = vld [vmem:[#allocation5 + $0x20] sm:$0xf]
    %v94 = vld [vmem:[#allocation5 + $0x24] sm:$0xf]
    %v95 = vld [vmem:[#allocation5 + $0x28] sm:$0xf]
    %v96 = vld [vmem:[#allocation5 + $0x2c] sm:$0xf]
    %v97 = vld [vmem:[#allocation5 + $0x30] sm:$0xf]
    %v98 = vld [vmem:[#allocation5 + $0x34] sm:$0xf]
    %v99 = vld [vmem:[#allocation5 + $0x38] sm:$0xf]
    %v100 = vld [vmem:[#allocation5 + $0x3c] sm:$0xf]
    %v101 = vld [vmem:[%s2] sm:$0x1]
    %v103 = vlaneseq
    %v104 = vshrl.u32 %v103, 7
    %v105 = vsub.s32 0, %v104
    %v106 = vrot.slane %v101, %v105
    %v110 = vunpack.c.l.b16 %v83
    %v111 = vunpack.c.l.b16 %v84
    %v112 = vpack.c.b16 %v111, %v110
    %v130 = vunpack.c.l.b16 %v85
    %v131 = vunpack.c.l.b16 %v86
    %v132 = vunpack.c.l.b16 %v87
    %v133 = vunpack.c.l.b16 %v88
    %v134 = vunpack.c.l.b16 %v89
    %v135 = vunpack.c.l.b16 %v90
    %v136 = vunpack.c.l.b16 %v91
    %v137 = vunpack.c.l.b16 %v92
    %v138 = vunpack.c.l.b16 %v93
    %v139 = vunpack.c.l.b16 %v94
    %v140 = vunpack.c.l.b16 %v95
    %v141 = vunpack.c.l.b16 %v96
    %v142 = vunpack.c.l.b16 %v97
    %v143 = vunpack.c.l.b16 %v98
    %v144 = vunpack.c.l.b16 %v99
    %v145 = vunpack.c.l.b16 %v100
    %v146 = vpack.c.b16 %v131, %v130
    %v147 = vpack.c.b16 %v133, %v132
    %v148 = vpack.c.b16 %v135, %v134
    %v149 = vpack.c.b16 %v137, %v136
    %v150 = vpack.c.b16 %v139, %v138
    %v151 = vpack.c.b16 %v141, %v140
    %v152 = vpack.c.b16 %v143, %v142
    %v153 = vpack.c.b16 %v145, %v144
    %162 = vmatprep.subr.bf16.mxu0 0
    %163 = vmatpush1.bf16.msra.mxu0 %v146
    %164 = vmatprep.subr.bf16.mxu0 0
    %165 = vmatpush1.bf16.msra.mxu0 %v147
    %166 = vmatprep.subr.bf16.mxu0 0
    %167 = vmatpush1.bf16.msra.mxu0 %v148
    %168 = vmatprep.subr.bf16.mxu0 0
    %169 = vmatpush1.bf16.msra.mxu0 %v149
    %170 = vmatprep.subr.bf16.mxu0 0
    %171 = vmatpush1.bf16.msra.mxu0 %v150
    %172 = vmatprep.subr.bf16.mxu0 0
    %173 = vmatpush1.bf16.msra.mxu0 %v151
    %174 = vmatprep.subr.bf16.mxu0 0
    %175 = vmatpush1.bf16.msra.mxu0 %v152
    %176 = vmatprep.subr.bf16.mxu0 0
    %177 = vmatpush1.bf16.msra.mxu0 %v153
    %178 = vmatprep.subr.bf16.mxu0 0
    %179 = vmatpush1.bf16.msra.mxu0 0
    %180 = vmatprep.subr.bf16.mxu0 0
    %181 = vmatpush1.bf16.msra.mxu0 0
    %182 = vmatprep.subr.bf16.mxu0 0
    %183 = vmatpush1.bf16.msra.mxu0 0
    %184 = vmatprep.subr.bf16.mxu0 0
    %185 = vmatpush1.bf16.msra.mxu0 0
    %186 = vmatprep.subr.bf16.mxu0 0
    %187 = vmatpush1.bf16.msra.mxu0 0
    %188 = vmatprep.subr.bf16.mxu0 0
    %189 = vmatpush1.bf16.msra.mxu0 0
    %190 = vmatprep.subr.bf16.mxu0 0
    %191 = vmatpush1.bf16.msra.mxu0 0
    %192 = vmatprep.subr.bf16.mxu0 0
    %193 = vmatpush1.bf16.msra.mxu0 0
    %194 = vmatprep.mubr.bf16.mxu0 0
    %195 = vmatmul.mubr.bf16.gmra.mrb[0].mxu0 %v112
    %v196 = vpop.f32.mrb[0].mxu0
    %v197 = vadd.f32 %v106, %v196
    %v198 = vpop.f32.mrb[0].mxu0
    %v199 = vpop.f32.mrb[0].mxu0
    %v200 = vadd.f32 %v106, %v199
    %v201 = vpop.f32.mrb[0].mxu0
    %202 = vdwg.mxu0
    %v203 = vmax.f32 %v197, 0.0
    %v204 = vmax.f32 %v200, 0.0
    %v205 = vpack.c.bf16 %v204, %v203
    %v206 = vld [vmem:[#allocation7] sm:$0xf]
    %v207 = vld [vmem:[#allocation7 + $0x4] sm:$0xf]
    %v208 = vld [vmem:[#allocation7 + $0x8] sm:$0xf]
    %v209 = vld [vmem:[#allocation7 + $0xc] sm:$0xf]
    %v210 = vld [vmem:[#allocation7 + $0x10] sm:$0xf]
    %v211 = vld [vmem:[#allocation7 + $0x14] sm:$0xf]
    %v212 = vld [vmem:[#allocation7 + $0x18] sm:$0xf]
    %v213 = vld [vmem:[#allocation7 + $0x1c] sm:$0xf]
    %v214 = vld [vmem:[#allocation7 + $0x20] sm:$0xf]
    %v215 = vld [vmem:[#allocation7 + $0x24] sm:$0xf]
    %v216 = vld [vmem:[#allocation7 + $0x28] sm:$0xf]
    %v217 = vld [vmem:[#allocation7 + $0x2c] sm:$0xf]
    %v218 = vld [vmem:[#allocation7 + $0x30] sm:$0xf]
    %v219 = vld [vmem:[#allocation7 + $0x34] sm:$0xf]
    %v220 = vld [vmem:[#allocation7 + $0x38] sm:$0xf]
    %v221 = vld [vmem:[#allocation7 + $0x3c] sm:$0xf]
    %v222 = vld [vmem:[%s4] sm:$0x1]
    %v224 = vlaneseq
    %v225 = vshrl.u32 %v224, 7
    %v226 = vsub.s32 0, %v225
    %v227 = vrot.slane %v222, %v226
    %v245 = vunpack.c.l.b16 %v206
    %v246 = vunpack.c.l.b16 %v207
    %v247 = vunpack.c.l.b16 %v208
    %v248 = vunpack.c.l.b16 %v209
    %v249 = vunpack.c.l.b16 %v210
    %v250 = vunpack.c.l.b16 %v211
    %v251 = vunpack.c.l.b16 %v212
    %v252 = vunpack.c.l.b16 %v213
    %v253 = vunpack.c.l.b16 %v214
    %v254 = vunpack.c.l.b16 %v215
    %v255 = vunpack.c.l.b16 %v216
    %v256 = vunpack.c.l.b16 %v217
    %v257 = vunpack.c.l.b16 %v218
    %v258 = vunpack.c.l.b16 %v219
    %v259 = vunpack.c.l.b16 %v220
    %v260 = vunpack.c.l.b16 %v221
    %v261 = vpack.c.b16 %v246, %v245
    %v262 = vpack.c.b16 %v248, %v247
    %v263 = vpack.c.b16 %v250, %v249
    %v264 = vpack.c.b16 %v252, %v251
    %v265 = vpack.c.b16 %v254, %v253
    %v266 = vpack.c.b16 %v256, %v255
    %v267 = vpack.c.b16 %v258, %v257
    %v268 = vpack.c.b16 %v260, %v259
    %277 = vmatprep.subr.bf16.mxu0 0
    %278 = vmatpush1.bf16.msra.mxu0 %v261
    %279 = vmatprep.subr.bf16.mxu0 0
    %280 = vmatpush1.bf16.msra.mxu0 %v262
    %281 = vmatprep.subr.bf16.mxu0 0
    %282 = vmatpush1.bf16.msra.mxu0 %v263
    %283 = vmatprep.subr.bf16.mxu0 0
    %284 = vmatpush1.bf16.msra.mxu0 %v264
    %285 = vmatprep.subr.bf16.mxu0 0
    %286 = vmatpush1.bf16.msra.mxu0 %v265
    %287 = vmatprep.subr.bf16.mxu0 0
    %288 = vmatpush1.bf16.msra.mxu0 %v266
    %289 = vmatprep.subr.bf16.mxu0 0
    %290 = vmatpush1.bf16.msra.mxu0 %v267
    %291 = vmatprep.subr.bf16.mxu0 0
    %292 = vmatpush1.bf16.msra.mxu0 %v268
    %293 = vmatprep.subr.bf16.mxu0 0
    %294 = vmatpush1.bf16.msra.mxu0 0
    %295 = vmatprep.subr.bf16.mxu0 0
    %296 = vmatpush1.bf16.msra.mxu0 0
    %297 = vmatprep.subr.bf16.mxu0 0
    %298 = vmatpush1.bf16.msra.mxu0 0
    %299 = vmatprep.subr.bf16.mxu0 0
    %300 = vmatpush1.bf16.msra.mxu0 0
    %301 = vmatprep.subr.bf16.mxu0 0
    %302 = vmatpush1.bf16.msra.mxu0 0
    %303 = vmatprep.subr.bf16.mxu0 0
    %304 = vmatpush1.bf16.msra.mxu0 0
    %305 = vmatprep.subr.bf16.mxu0 0
    %306 = vmatpush1.bf16.msra.mxu0 0
    %307 = vmatprep.subr.bf16.mxu0 0
    %308 = vmatpush1.bf16.msra.mxu0 0
    %309 = vmatprep.mubr.bf16.mxu0 0
    %310 = vmatmul.mubr.bf16.gmra.mrb[0].mxu0 %v205
    %v311 = vpop.f32.mrb[0].mxu0
    %v312 = vadd.f32 %v227, %v311
    %v313 = vpop.f32.mrb[0].mxu0
    %v314 = vpop.f32.mrb[0].mxu0
    %v315 = vadd.f32 %v227, %v314
    %v316 = vpop.f32.mrb[0].mxu0
    %317 = vdwg.mxu0
    %v318 = vmax.f32 %v312, 0.0
    %v319 = vmax.f32 %v315, 0.0
    %v320 = vpack.c.bf16 %v319, %v318
    %v321 = vld [vmem:[#allocation8] sm:$0xf]
    %v322 = vld [vmem:[#allocation8 + $0x4] sm:$0xf]
    %v323 = vld [vmem:[#allocation8 + $0x8] sm:$0xf]
    %v324 = vld [vmem:[#allocation8 + $0xc] sm:$0xf]
    %v325 = vld [vmem:[#allocation8 + $0x10] sm:$0xf]
    %v326 = vld [vmem:[#allocation8 + $0x14] sm:$0xf]
    %v327 = vld [vmem:[#allocation8 + $0x18] sm:$0xf]
    %v328 = vld [vmem:[#allocation8 + $0x1c] sm:$0xf]
    %v329 = vld [vmem:[#allocation8 + $0x20] sm:$0xf]
    %v330 = vld [vmem:[#allocation8 + $0x24] sm:$0xf]
    %v331 = vld [vmem:[#allocation8 + $0x28] sm:$0xf]
    %v332 = vld [vmem:[#allocation8 + $0x2c] sm:$0xf]
    %v333 = vld [vmem:[#allocation8 + $0x30] sm:$0xf]
    %v334 = vld [vmem:[#allocation8 + $0x34] sm:$0xf]
    %v335 = vld [vmem:[#allocation8 + $0x38] sm:$0xf]
    %v336 = vld [vmem:[#allocation8 + $0x3c] sm:$0xf]
    %v337 = vld [vmem:[%s6] sm:$0x1]
    %v339 = vlaneseq
    %v340 = vshrl.u32 %v339, 7
    %v341 = vsub.s32 0, %v340
    %v342 = vrot.slane %v337, %v341
    %v360 = vunpack.c.l.b16 %v321
    %v361 = vunpack.c.l.b16 %v322
    %v362 = vunpack.c.l.b16 %v323
    %v363 = vunpack.c.l.b16 %v324
    %v364 = vunpack.c.l.b16 %v325
    %v365 = vunpack.c.l.b16 %v326
    %v366 = vunpack.c.l.b16 %v327
    %v367 = vunpack.c.l.b16 %v328
    %v368 = vunpack.c.l.b16 %v329
    %v369 = vunpack.c.l.b16 %v330
    %v370 = vunpack.c.l.b16 %v331
    %v371 = vunpack.c.l.b16 %v332
    %v372 = vunpack.c.l.b16 %v333
    %v373 = vunpack.c.l.b16 %v334
    %v374 = vunpack.c.l.b16 %v335
    %v375 = vunpack.c.l.b16 %v336
    %v376 = vpack.c.b16 %v361, %v360
    %v377 = vpack.c.b16 %v363, %v362
    %v378 = vpack.c.b16 %v365, %v364
    %v379 = vpack.c.b16 %v367, %v366
    %v380 = vpack.c.b16 %v369, %v368
    %v381 = vpack.c.b16 %v371, %v370
    %v382 = vpack.c.b16 %v373, %v372
    %v383 = vpack.c.b16 %v375, %v374
    %392 = vmatprep.subr.bf16.mxu0 0
    %393 = vmatpush1.bf16.msra.mxu0 %v376
    %394 = vmatprep.subr.bf16.mxu0 0
    %395 = vmatpush1.bf16.msra.mxu0 %v377
    %396 = vmatprep.subr.bf16.mxu0 0
    %397 = vmatpush1.bf16.msra.mxu0 %v378
    %398 = vmatprep.subr.bf16.mxu0 0
    %399 = vmatpush1.bf16.msra.mxu0 %v379
    %400 = vmatprep.subr.bf16.mxu0 0
    %401 = vmatpush1.bf16.msra.mxu0 %v380
    %402 = vmatprep.subr.bf16.mxu0 0
    %403 = vmatpush1.bf16.msra.mxu0 %v381
    %404 = vmatprep.subr.bf16.mxu0 0
    %405 = vmatpush1.bf16.msra.mxu0 %v382
    %406 = vmatprep.subr.bf16.mxu0 0
    %407 = vmatpush1.bf16.msra.mxu0 %v383
    %408 = vmatprep.subr.bf16.mxu0 0
    %409 = vmatpush1.bf16.msra.mxu0 0
    %410 = vmatprep.subr.bf16.mxu0 0
    %411 = vmatpush1.bf16.msra.mxu0 0
    %412 = vmatprep.subr.bf16.mxu0 0
    %413 = vmatpush1.bf16.msra.mxu0 0
    %414 = vmatprep.subr.bf16.mxu0 0
    %415 = vmatpush1.bf16.msra.mxu0 0
    %416 = vmatprep.subr.bf16.mxu0 0
    %417 = vmatpush1.bf16.msra.mxu0 0
    %418 = vmatprep.subr.bf16.mxu0 0
    %419 = vmatpush1.bf16.msra.mxu0 0
    %420 = vmatprep.subr.bf16.mxu0 0
    %421 = vmatpush1.bf16.msra.mxu0 0
    %422 = vmatprep.subr.bf16.mxu0 0
    %423 = vmatpush1.bf16.msra.mxu0 0
    %424 = vmatprep.mubr.bf16.mxu0 0
    %425 = vmatmul.mubr.bf16.gmra.mrb[0].mxu0 %v320
    %v426 = vpop.f32.mrb[0].mxu0
    %v427 = vadd.f32 %v342, %v426
    %v428 = vpop.f32.mrb[0].mxu0
    %v429 = vpop.f32.mrb[0].mxu0
    %v430 = vadd.f32 %v342, %v429
    %v431 = vpop.f32.mrb[0].mxu0
    %432 = vdwg.mxu0
    %433 = vst [vmem:[#allocation10] sm:$0xff] %v427
    %434 = vst [vmem:[#allocation10 + $0x8] sm:$0xff] %v430
    // Predicated region
    $region46: #{tpu_custom_call.1} parent=1 // pred_check
      _
    $region47: #{tpu_custom_call.1} parent=1 // pred_check_branch
      %436 = sbr.rel (0) target = $region49
    $region48: #{tpu_custom_call.1} parent=1 // pred_region
      %s438 = ssub.s32 256, 256
      %439 = vsyncadd [#allocation4], %s438
      %s440 = sshll.u32 [#allocation10], 4
      %s441 = int_to_ptr.vmem [resolvable:$true] %s440
      %446 = dma.vmem_to_hbm [thread:$0]  %s441, 256, %s7, [#allocation4], 128, 128, 8
    $region49: #{tpu_custom_call.1} parent=1 // pred_fallthru
      _
    // Predicated region
    $region50: #{tpu_custom_call.1} parent=1 // pred_check
      _
    $region51: #{tpu_custom_call.1} parent=1 // pred_check_branch
      %448 = sbr.rel (0) target = $region53
    $region52: #{tpu_custom_call.1} parent=1 // pred_region
      %449 = dma.done [#allocation4], 256
    $region53: #{tpu_custom_call.1} parent=1 // pred_fallthru
      _
    %450 = vsyncpa [#allocation3], 1
    %451 = vsyncpa [#allocation6], 1
    %452 = vsyncpa [#allocation9], 1
    %453 = vsyncpa [#allocation4], 1

// kernel: tpu_custom_call.1
$region0: #{tpu_custom_call.1}
  #allocation0 [shape = 'u32[]', space=smem, size = 0x4, offset = 0x4, fixed_abs, tag = 'smem constant byte address 0x4 - core index']
  #allocation1 [shape = 'u32[144,128]{1,0:T(1,128)}', space=vmem, size = 0x12000, scoped, tag = 'internal scratch']
  %s0 = inlined_call_operand.hbm [shape: bf16[16,128], index: 0, kind: input, shape index: {}]
  %s1 = inlined_call_operand.hbm [shape: bf16[128,128], index: 1, kind: input, shape index: {}]
  %s2 = inlined_call_operand.vmem [shape: f32[1,128], index: 2, kind: input, shape index: {}]
  %s3 = inlined_call_operand.hbm [shape: bf16[128,128], index: 3, kind: input, shape index: {}]
  %s4 = inlined_call_operand.vmem [shape: f32[1,128], index: 4, kind: input, shape index: {}]
  %s5 = inlined_call_operand.hbm [shape: bf16[128,128], index: 5, kind: input, shape index: {}]
  %s6 = inlined_call_operand.vmem [shape: f32[1,128], index: 6, kind: input, shape index: {}]
  %s7 = inlined_call_operand.hbm [shape: f32[16,128], index: 7, kind: output, shape index: {}]
  %s8 = sld [smem:[#allocation0]]
  $region54: #{tpu_custom_call.1} parent=0
    _
  %s10 = ssub.s32 1, %s8
  %s11 = scalar_select 0, %s10, %s8
  $region1: #{tpu_custom_call.1} parent=0
    #allocation2 [shape = 'u8[4096]{0}', space=vmem, size = 0x1000, scoped, tag = 'input window, operand 0, single buffered']
    #allocation3 [shape = 's32[1]{0}', space=sflag, size = 0x4, scoped, tag = 'scoped memory for tpu_custom_call.1']
    #allocation4 [shape = 's32[1]{0}', space=sflag, size = 0x4, scoped, tag = 'scoped memory for tpu_custom_call.1']
    #allocation5 [shape = 'u8[32768]{0}', space=vmem, size = 0x8000, scoped, tag = 'input window, operand 1, single buffered']
    #allocation6 [shape = 's32[1]{0}', space=sflag, size = 0x4, scoped, tag = 'scoped memory for tpu_custom_call.1']
    #allocation7 [shape = 'u8[32768]{0}', space=vmem, size = 0x8000, scoped, tag = 'input window, operand 3, single buffered']
    #allocation8 [shape = 'u8[32768]{0}', space=vmem, size = 0x8000, scoped, tag = 'input window, operand 5, single buffered']
    #allocation9 [shape = 's32[1]{0}', space=sflag, size = 0x4, scoped, tag = 'scoped memory for tpu_custom_call.1']
    #allocation10 [shape = 'u8[8192]{0}', space=vmem, size = 0x2000, scoped, tag = 'output window, operand 0, single buffered']
    %12 = vsyncpa [#allocation3], 0
    %13 = vsyncpa [#allocation6], 0
    %14 = vsyncpa [#allocation9], 0
    %15 = vsyncpa [#allocation4], 0
    // Predicated region
    $region2: #{tpu_custom_call.1} parent=1 // pred_check
      _
    $region3: #{tpu_custom_call.1} parent=1 // pred_check_branch
      %17 = sbr.rel (0) target = $region5
    $region4: #{tpu_custom_call.1} parent=1 // pred_region
      %s19 = ssub.s32 128, 128
      %20 = vsyncadd [#allocation3], %s19
      %s21 = sshll.u32 [#allocation2], 4
      %s22 = int_to_ptr.vmem [resolvable:$true] %s21
      %27 = dma.hbm_to_vmem [thread:$0]  %s0, 128, %s22, [#allocation3], 64, 64, 4
    $region5: #{tpu_custom_call.1} parent=1 // pred_fallthru
      _
    // Predicated region
    $region6: #{tpu_custom_call.1} parent=1 // pred_check
      _
    $region7: #{tpu_custom_call.1} parent=1 // pred_check_branch
      %29 = sbr.rel (0) target = $region9
    $region8: #{tpu_custom_call.1} parent=1 // pred_region
      %s31 = ssub.s32 1024, 1024
      %32 = vsyncadd [#allocation6], %s31
      %s33 = sshll.u32 [#allocation5], 4
      %s34 = int_to_ptr.vmem [resolvable:$true] %s33
      %39 = dma.hbm_to_vmem [thread:$0]  %s1, 1024, %s34, [#allocation6], 64, 64, 4
    $region9: #{tpu_custom_call.1} parent=1 // pred_fallthru
      _
    // Predicated region
    $region10: #{tpu_custom_call.1} parent=1 // pred_check
      _
    $region11: #{tpu_custom_call.1} parent=1 // pred_check_branch
      %41 = sbr.rel (0) target = $region13
    $region12: #{tpu_custom_call.1} parent=1 // pred_region
      _
    $region13: #{tpu_custom_call.1} parent=1 // pred_fallthru
      _
    // Predicated region
    $region14: #{tpu_custom_call.1} parent=1 // pred_check
      _
    $region15: #{tpu_custom_call.1} parent=1 // pred_check_branch
      %43 = sbr.rel (0) target = $region17
    $region16: #{tpu_custom_call.1} parent=1 // pred_region
      %s45 = ssub.s32 1024, 1024
      %46 = vsyncadd [#allocation6], %s45
      %s47 = sshll.u32 [#allocation7], 4
      %s48 = int_to_ptr.vmem [resolvable:$true] %s47
      %53 = dma.hbm_to_vmem [thread:$0]  %s3, 1024, %s48, [#allocation6], 64, 64, 4
    $region17: #{tpu_custom_call.1} parent=1 // pred_fallthru
      _
    // Predicated region
    $region18: #{tpu_custom_call.1} parent=1 // pred_check
      _
    $region19: #{tpu_custom_call.1} parent=1 // pred_check_branch
      %55 = sbr.rel (0) target = $region21
    $region20: #{tpu_custom_call.1} parent=1 // pred_region
      _
    $region21: #{tpu_custom_call.1} parent=1 // pred_fallthru
      _
    // Predicated region
    $region22: #{tpu_custom_call.1} parent=1 // pred_check
      _
    $region23: #{tpu_custom_call.1} parent=1 // pred_check_branch
      %57 = sbr.rel (0) target = $region25
    $region24: #{tpu_custom_call.1} parent=1 // pred_region
      %s59 = ssub.s32 1024, 1024
      %60 = vsyncadd [#allocation9], %s59
      %s61 = sshll.u32 [#allocation8], 4
      %s62 = int_to_ptr.vmem [resolvable:$true] %s61
      %67 = dma.hbm_to_vmem [thread:$0]  %s5, 1024, %s62, [#allocation9], 64, 64, 4
    $region25: #{tpu_custom_call.1} parent=1 // pred_fallthru
      _
    // Predicated region
    $region26: #{tpu_custom_call.1} parent=1 // pred_check
      _
    $region27: #{tpu_custom_call.1} parent=1 // pred_check_branch
      %69 = sbr.rel (0) target = $region29
    $region28: #{tpu_custom_call.1} parent=1 // pred_region
      _
    $region29: #{tpu_custom_call.1} parent=1 // pred_fallthru
      _
    // Predicated region
    $region30: #{tpu_custom_call.1} parent=1 // pred_check
      _
    $region31: #{tpu_custom_call.1} parent=1 // pred_check_branch
      %71 = sbr.rel (0) target = $region33
    $region32: #{tpu_custom_call.1} parent=1 // pred_region
      %72 = dma.done [#allocation3], 128
    $region33: #{tpu_custom_call.1} parent=1 // pred_fallthru
      _
    // Predicated region
    $region34: #{tpu_custom_call.1} parent=1 // pred_check
      _
    $region35: #{tpu_custom_call.1} parent=1 // pred_check_branch
      %74 = sbr.rel (0) target = $region37
    $region36: #{tpu_custom_call.1} parent=1 // pred_region
      %75 = dma.done [#allocation6], 1024
    $region37: #{tpu_custom_call.1} parent=1 // pred_fallthru
      _
    // Predicated region
    $region38: #{tpu_custom_call.1} parent=1 // pred_check
      _
    $region39: #{tpu_custom_call.1} parent=1 // pred_check_branch
      %77 = sbr.rel (0) target = $region41
    $region40: #{tpu_custom_call.1} parent=1 // pred_region
      %78 = dma.done [#allocation6], 1024
    $region41: #{tpu_custom_call.1} parent=1 // pred_fallthru
      _
    // Predicated region
    $region42: #{tpu_custom_call.1} parent=1 // pred_check
      _
    $region43: #{tpu_custom_call.1} parent=1 // pred_check_branch
      %80 = sbr.rel (0) target = $region45
    $region44: #{tpu_custom_call.1} parent=1 // pred_region
      %81 = dma.done [#allocation9], 1024
    $region45: #{tpu_custom_call.1} parent=1 // pred_fallthru
      _
    %v83 = vld [vmem:[#allocation2] sm:$0xf]
    %v84 = vld [vmem:[#allocation2 + $0x4] sm:$0xf]
    %v85 = vld [vmem:[#allocation5] sm:$0xf]
    %v86 = vld [vmem:[#allocation5 + $0x4] sm:$0xf]
    %v87 = vld [vmem:[#allocation5 + $0x8] sm:$0xf]
    %v88 = vld [vmem:[#allocation5 + $0xc] sm:$0xf]
    %v89 = vld [vmem:[#allocation5 + $0x10] sm:$0xf]
    %v90 = vld [vmem:[#allocation5 + $0x14] sm:$0xf]
    %v91 = vld [vmem:[#allocation5 + $0x18] sm:$0xf]
    %v92 = vld [vmem:[#allocation5 + $0x1c] sm:$0xf]
    %v93 = vld [vmem:[#allocation5 + $0x20] sm:$0xf]
    %v94 = vld [vmem:[#allocation5 + $0x24] sm:$0xf]
    %v95 = vld [vmem:[#allocation5 + $0x28] sm:$0xf]
    %v96 = vld [vmem:[#allocation5 + $0x2c] sm:$0xf]
    %v97 = vld [vmem:[#allocation5 + $0x30] sm:$0xf]
    %v98 = vld [vmem:[#allocation5 + $0x34] sm:$0xf]
    %v99 = vld [vmem:[#allocation5 + $0x38] sm:$0xf]
    %v100 = vld [vmem:[#allocation5 + $0x3c] sm:$0xf]
    %v101 = vld [vmem:[%s2] sm:$0x1]
    %v103 = vlaneseq
    %v104 = vshrl.u32 %v103, 7
    %v105 = vsub.s32 0, %v104
    %v106 = vrot.slane %v101, %v105
    %v110 = vunpack.c.l.b16 %v83
    %v111 = vunpack.c.l.b16 %v84
    %v112 = vpack.c.b16 %v111, %v110
    %v130 = vunpack.c.l.b16 %v85
    %v131 = vunpack.c.l.b16 %v86
    %v132 = vunpack.c.l.b16 %v87
    %v133 = vunpack.c.l.b16 %v88
    %v134 = vunpack.c.l.b16 %v89
    %v135 = vunpack.c.l.b16 %v90
    %v136 = vunpack.c.l.b16 %v91
    %v137 = vunpack.c.l.b16 %v92
    %v138 = vunpack.c.l.b16 %v93
    %v139 = vunpack.c.l.b16 %v94
    %v140 = vunpack.c.l.b16 %v95
    %v141 = vunpack.c.l.b16 %v96
    %v142 = vunpack.c.l.b16 %v97
    %v143 = vunpack.c.l.b16 %v98
    %v144 = vunpack.c.l.b16 %v99
    %v145 = vunpack.c.l.b16 %v100
    %v146 = vpack.c.b16 %v131, %v130
    %v147 = vpack.c.b16 %v133, %v132
    %v148 = vpack.c.b16 %v135, %v134
    %v149 = vpack.c.b16 %v137, %v136
    %v150 = vpack.c.b16 %v139, %v138
    %v151 = vpack.c.b16 %v141, %v140
    %v152 = vpack.c.b16 %v143, %v142
    %v153 = vpack.c.b16 %v145, %v144
    %162 = vmatprep.subr.bf16.mxu0 0
    %163 = vmatpush1.bf16.msra.mxu0 %v146
    %164 = vmatprep.subr.bf16.mxu0 0
    %165 = vmatpush1.bf16.msra.mxu0 %v147
    %166 = vmatprep.subr.bf16.mxu0 0
    %167 = vmatpush1.bf16.msra.mxu0 %v148
    %168 = vmatprep.subr.bf16.mxu0 0
    %169 = vmatpush1.bf16.msra.mxu0 %v149
    %170 = vmatprep.subr.bf16.mxu0 0
    %171 = vmatpush1.bf16.msra.mxu0 %v150
    %172 = vmatprep.subr.bf16.mxu0 0
    %173 = vmatpush1.bf16.msra.mxu0 %v151
    %174 = vmatprep.subr.bf16.mxu0 0
    %175 = vmatpush1.bf16.msra.mxu0 %v152
    %176 = vmatprep.subr.bf16.mxu0 0
    %177 = vmatpush1.bf16.msra.mxu0 %v153
    %178 = vmatprep.subr.bf16.mxu0 0
    %179 = vmatpush1.bf16.msra.mxu0 0
    %180 = vmatprep.subr.bf16.mxu0 0
    %181 = vmatpush1.bf16.msra.mxu0 0
    %182 = vmatprep.subr.bf16.mxu0 0
    %183 = vmatpush1.bf16.msra.mxu0 0
    %184 = vmatprep.subr.bf16.mxu0 0
    %185 = vmatpush1.bf16.msra.mxu0 0
    %186 = vmatprep.subr.bf16.mxu0 0
    %187 = vmatpush1.bf16.msra.mxu0 0
    %188 = vmatprep.subr.bf16.mxu0 0
    %189 = vmatpush1.bf16.msra.mxu0 0
    %190 = vmatprep.subr.bf16.mxu0 0
    %191 = vmatpush1.bf16.msra.mxu0 0
    %192 = vmatprep.subr.bf16.mxu0 0
    %193 = vmatpush1.bf16.msra.mxu0 0
    %194 = vmatprep.mubr.bf16.mxu0 0
    %195 = vmatmul.mubr.bf16.gmra.mrb[0].mxu0 %v112
    %v196 = vpop.f32.mrb[0].mxu0
    %v197 = vadd.f32 %v106, %v196
    %v198 = vpop.f32.mrb[0].mxu0
    %v199 = vpop.f32.mrb[0].mxu0
    %v200 = vadd.f32 %v106, %v199
    %v201 = vpop.f32.mrb[0].mxu0
    %202 = vdwg.mxu0
    %v203 = vmax.f32 %v197, 0.0
    %v204 = vmax.f32 %v200, 0.0
    %v205 = vpack.c.bf16 %v204, %v203
    %v206 = vld [vmem:[#allocation7] sm:$0xf]
    %v207 = vld [vmem:[#allocation7 + $0x4] sm:$0xf]
    %v208 = vld [vmem:[#allocation7 + $0x8] sm:$0xf]
    %v209 = vld [vmem:[#allocation7 + $0xc] sm:$0xf]
    %v210 = vld [vmem:[#allocation7 + $0x10] sm:$0xf]
    %v211 = vld [vmem:[#allocation7 + $0x14] sm:$0xf]
    %v212 = vld [vmem:[#allocation7 + $0x18] sm:$0xf]
    %v213 = vld [vmem:[#allocation7 + $0x1c] sm:$0xf]
    %v214 = vld [vmem:[#allocation7 + $0x20] sm:$0xf]
    %v215 = vld [vmem:[#allocation7 + $0x24] sm:$0xf]
    %v216 = vld [vmem:[#allocation7 + $0x28] sm:$0xf]
    %v217 = vld [vmem:[#allocation7 + $0x2c] sm:$0xf]
    %v218 = vld [vmem:[#allocation7 + $0x30] sm:$0xf]
    %v219 = vld [vmem:[#allocation7 + $0x34] sm:$0xf]
    %v220 = vld [vmem:[#allocation7 + $0x38] sm:$0xf]
    %v221 = vld [vmem:[#allocation7 + $0x3c] sm:$0xf]
    %v222 = vld [vmem:[%s4] sm:$0x1]
    %v224 = vlaneseq
    %v225 = vshrl.u32 %v224, 7
    %v226 = vsub.s32 0, %v225
    %v227 = vrot.slane %v222, %v226
    %v245 = vunpack.c.l.b16 %v206
    %v246 = vunpack.c.l.b16 %v207
    %v247 = vunpack.c.l.b16 %v208
    %v248 = vunpack.c.l.b16 %v209
    %v249 = vunpack.c.l.b16 %v210
    %v250 = vunpack.c.l.b16 %v211
    %v251 = vunpack.c.l.b16 %v212
    %v252 = vunpack.c.l.b16 %v213
    %v253 = vunpack.c.l.b16 %v214
    %v254 = vunpack.c.l.b16 %v215
    %v255 = vunpack.c.l.b16 %v216
    %v256 = vunpack.c.l.b16 %v217
    %v257 = vunpack.c.l.b16 %v218
    %v258 = vunpack.c.l.b16 %v219
    %v259 = vunpack.c.l.b16 %v220
    %v260 = vunpack.c.l.b16 %v221
    %v261 = vpack.c.b16 %v246, %v245
    %v262 = vpack.c.b16 %v248, %v247
    %v263 = vpack.c.b16 %v250, %v249
    %v264 = vpack.c.b16 %v252, %v251
    %v265 = vpack.c.b16 %v254, %v253
    %v266 = vpack.c.b16 %v256, %v255
    %v267 = vpack.c.b16 %v258, %v257
    %v268 = vpack.c.b16 %v260, %v259
    %277 = vmatprep.subr.bf16.mxu0 0
    %278 = vmatpush1.bf16.msra.mxu0 %v261
    %279 = vmatprep.subr.bf16.mxu0 0
    %280 = vmatpush1.bf16.msra.mxu0 %v262
    %281 = vmatprep.subr.bf16.mxu0 0
    %282 = vmatpush1.bf16.msra.mxu0 %v263
    %283 = vmatprep.subr.bf16.mxu0 0
    %284 = vmatpush1.bf16.msra.mxu0 %v264
    %285 = vmatprep.subr.bf16.mxu0 0
    %286 = vmatpush1.bf16.msra.mxu0 %v265
    %287 = vmatprep.subr.bf16.mxu0 0
    %288 = vmatpush1.bf16.msra.mxu0 %v266
    %289 = vmatprep.subr.bf16.mxu0 0
    %290 = vmatpush1.bf16.msra.mxu0 %v267
    %291 = vmatprep.subr.bf16.mxu0 0
    %292 = vmatpush1.bf16.msra.mxu0 %v268
    %293 = vmatprep.subr.bf16.mxu0 0
    %294 = vmatpush1.bf16.msra.mxu0 0
    %295 = vmatprep.subr.bf16.mxu0 0
    %296 = vmatpush1.bf16.msra.mxu0 0
    %297 = vmatprep.subr.bf16.mxu0 0
    %298 = vmatpush1.bf16.msra.mxu0 0
    %299 = vmatprep.subr.bf16.mxu0 0
    %300 = vmatpush1.bf16.msra.mxu0 0
    %301 = vmatprep.subr.bf16.mxu0 0
    %302 = vmatpush1.bf16.msra.mxu0 0
    %303 = vmatprep.subr.bf16.mxu0 0
    %304 = vmatpush1.bf16.msra.mxu0 0
    %305 = vmatprep.subr.bf16.mxu0 0
    %306 = vmatpush1.bf16.msra.mxu0 0
    %307 = vmatprep.subr.bf16.mxu0 0
    %308 = vmatpush1.bf16.msra.mxu0 0
    %309 = vmatprep.mubr.bf16.mxu0 0
    %310 = vmatmul.mubr.bf16.gmra.mrb[0].mxu0 %v205
    %v311 = vpop.f32.mrb[0].mxu0
    %v312 = vadd.f32 %v227, %v311
    %v313 = vpop.f32.mrb[0].mxu0
    %v314 = vpop.f32.mrb[0].mxu0
    %v315 = vadd.f32 %v227, %v314
    %v316 = vpop.f32.mrb[0].mxu0
    %317 = vdwg.mxu0
    %v318 = vmax.f32 %v312, 0.0
    %v319 = vmax.f32 %v315, 0.0
    %v320 = vpack.c.bf16 %v319, %v318
    %v321 = vld [vmem:[#allocation8] sm:$0xf]
    %v322 = vld [vmem:[#allocation8 + $0x4] sm:$0xf]
    %v323 = vld [vmem:[#allocation8 + $0x8] sm:$0xf]
    %v324 = vld [vmem:[#allocation8 + $0xc] sm:$0xf]
    %v325 = vld [vmem:[#allocation8 + $0x10] sm:$0xf]
    %v326 = vld [vmem:[#allocation8 + $0x14] sm:$0xf]
    %v327 = vld [vmem:[#allocation8 + $0x18] sm:$0xf]
    %v328 = vld [vmem:[#allocation8 + $0x1c] sm:$0xf]
    %v329 = vld [vmem:[#allocation8 + $0x20] sm:$0xf]
    %v330 = vld [vmem:[#allocation8 + $0x24] sm:$0xf]
    %v331 = vld [vmem:[#allocation8 + $0x28] sm:$0xf]
    %v332 = vld [vmem:[#allocation8 + $0x2c] sm:$0xf]
    %v333 = vld [vmem:[#allocation8 + $0x30] sm:$0xf]
    %v334 = vld [vmem:[#allocation8 + $0x34] sm:$0xf]
    %v335 = vld [vmem:[#allocation8 + $0x38] sm:$0xf]
    %v336 = vld [vmem:[#allocation8 + $0x3c] sm:$0xf]
    %v337 = vld [vmem:[%s6] sm:$0x1]
    %v339 = vlaneseq
    %v340 = vshrl.u32 %v339, 7
    %v341 = vsub.s32 0, %v340
    %v342 = vrot.slane %v337, %v341
    %v360 = vunpack.c.l.b16 %v321
    %v361 = vunpack.c.l.b16 %v322
    %v362 = vunpack.c.l.b16 %v323
    %v363 = vunpack.c.l.b16 %v324
    %v364 = vunpack.c.l.b16 %v325
    %v365 = vunpack.c.l.b16 %v326
    %v366 = vunpack.c.l.b16 %v327
    %v367 = vunpack.c.l.b16 %v328
    %v368 = vunpack.c.l.b16 %v329
    %v369 = vunpack.c.l.b16 %v330
    %v370 = vunpack.c.l.b16 %v331
    %v371 = vunpack.c.l.b16 %v332
    %v372 = vunpack.c.l.b16 %v333
    %v373 = vunpack.c.l.b16 %v334
    %v374 = vunpack.c.l.b16 %v335
    %v375 = vunpack.c.l.b16 %v336
    %v376 = vpack.c.b16 %v361, %v360
    %v377 = vpack.c.b16 %v363, %v362
    %v378 = vpack.c.b16 %v365, %v364
    %v379 = vpack.c.b16 %v367, %v366
    %v380 = vpack.c.b16 %v369, %v368
    %v381 = vpack.c.b16 %v371, %v370
    %v382 = vpack.c.b16 %v373, %v372
    %v383 = vpack.c.b16 %v375, %v374
    %392 = vmatprep.subr.bf16.mxu0 0
    %393 = vmatpush1.bf16.msra.mxu0 %v376
    %394 = vmatprep.subr.bf16.mxu0 0
    %395 = vmatpush1.bf16.msra.mxu0 %v377
    %396 = vmatprep.subr.bf16.mxu0 0
    %397 = vmatpush1.bf16.msra.mxu0 %v378
    %398 = vmatprep.subr.bf16.mxu0 0
    %399 = vmatpush1.bf16.msra.mxu0 %v379
    %400 = vmatprep.subr.bf16.mxu0 0
    %401 = vmatpush1.bf16.msra.mxu0 %v380
    %402 = vmatprep.subr.bf16.mxu0 0
    %403 = vmatpush1.bf16.msra.mxu0 %v381
    %404 = vmatprep.subr.bf16.mxu0 0
    %405 = vmatpush1.bf16.msra.mxu0 %v382
    %406 = vmatprep.subr.bf16.mxu0 0
    %407 = vmatpush1.bf16.msra.mxu0 %v383
    %408 = vmatprep.subr.bf16.mxu0 0
    %409 = vmatpush1.bf16.msra.mxu0 0
    %410 = vmatprep.subr.bf16.mxu0 0
    %411 = vmatpush1.bf16.msra.mxu0 0
    %412 = vmatprep.subr.bf16.mxu0 0
    %413 = vmatpush1.bf16.msra.mxu0 0
    %414 = vmatprep.subr.bf16.mxu0 0
    %415 = vmatpush1.bf16.msra.mxu0 0
    %416 = vmatprep.subr.bf16.mxu0 0
    %417 = vmatpush1.bf16.msra.mxu0 0
    %418 = vmatprep.subr.bf16.mxu0 0
    %419 = vmatpush1.bf16.msra.mxu0 0
    %420 = vmatprep.subr.bf16.mxu0 0
    %421 = vmatpush1.bf16.msra.mxu0 0
    %422 = vmatprep.subr.bf16.mxu0 0
    %423 = vmatpush1.bf16.msra.mxu0 0
    %424 = vmatprep.mubr.bf16.mxu0 0
    %425 = vmatmul.mubr.bf16.gmra.mrb[0].mxu0 %v320
    %v426 = vpop.f32.mrb[0].mxu0
    %v427 = vadd.f32 %v342, %v426
    %v428 = vpop.f32.mrb[0].mxu0
    %v429 = vpop.f32.mrb[0].mxu0
    %v430 = vadd.f32 %v342, %v429
    %v431 = vpop.f32.mrb[0].mxu0
    %432 = vdwg.mxu0
    %433 = vst [vmem:[#allocation10] sm:$0xff] %v427
    %434 = vst [vmem:[#allocation10 + $0x8] sm:$0xff] %v430
    // Predicated region
    $region46: #{tpu_custom_call.1} parent=1 // pred_check
      _
    $region47: #{tpu_custom_call.1} parent=1 // pred_check_branch
      %436 = sbr.rel (0) target = $region49
    $region48: #{tpu_custom_call.1} parent=1 // pred_region
      %s438 = ssub.s32 256, 256
      %439 = vsyncadd [#allocation4], %s438
      %s440 = sshll.u32 [#allocation10], 4
      %s441 = int_to_ptr.vmem [resolvable:$true] %s440
      %446 = dma.vmem_to_hbm [thread:$0]  %s441, 256, %s7, [#allocation4], 128, 128, 8
    $region49: #{tpu_custom_call.1} parent=1 // pred_fallthru
      _
    // Predicated region
    $region50: #{tpu_custom_call.1} parent=1 // pred_check
      _
    $region51: #{tpu_custom_call.1} parent=1 // pred_check_branch
      %448 = sbr.rel (0) target = $region53
    $region52: #{tpu_custom_call.1} parent=1 // pred_region
      %449 = dma.done [#allocation4], 256
    $region53: #{tpu_custom_call.1} parent=1 // pred_fallthru
      _
    %450 = vsyncpa [#allocation3], 1
    %451 = vsyncpa [#allocation6], 1
    %452 = vsyncpa [#allocation9], 1
    %453 = vsyncpa [#allocation4], 1

// kernel: tpu_custom_call.1
$region0: #{tpu_custom_call.1}
  #allocation0 [shape = 'u32[]', space=smem, size = 0x4, offset = 0x4, fixed_abs, tag = 'smem constant byte address 0x4 - core index']
  #allocation1 [shape = 'u32[144,128]{1,0:T(1,128)}', space=vmem, size = 0x12000, scoped, tag = 'internal scratch']
  #allocation2 [shape = 'f32[16,128]{1,0:T(8,128)}', space=vmem, size = 0x2000, scoped, tag = 'scratch operand']
  %s0 = inlined_call_operand.hbm [shape: bf16[16,128], index: 0, kind: input, shape index: {}]
  %s1 = inlined_call_operand.hbm [shape: bf16[128,128], index: 1, kind: input, shape index: {}]
  %s2 = inlined_call_operand.vmem [shape: f32[1,128], index: 2, kind: input, shape index: {}]
  %s3 = inlined_call_operand.hbm [shape: bf16[16,128], index: 3, kind: output, shape index: {}]
  %s4 = sld [smem:[#allocation0]]
  $region38: #{tpu_custom_call.1} parent=0
    _
  %s6 = ssub.s32 1, %s4
  %s7 = scalar_select 0, %s6, %s4
  $region1: #{tpu_custom_call.1} parent=0
    #allocation3 [shape = 'u8[4096]{0}', space=vmem, size = 0x1000, scoped, tag = 'input window, operand 0, single buffered']
    #allocation4 [shape = 's32[1]{0}', space=sflag, size = 0x4, scoped, tag = 'scoped memory for tpu_custom_call.1']
    #allocation5 [shape = 's32[1]{0}', space=sflag, size = 0x4, scoped, tag = 'scoped memory for tpu_custom_call.1']
    #allocation6 [shape = 'u8[32768]{0}', space=vmem, size = 0x8000, scoped, tag = 'input window, operand 1, single buffered']
    #allocation7 [shape = 's32[1]{0}', space=sflag, size = 0x4, scoped, tag = 'scoped memory for tpu_custom_call.1']
    #allocation8 [shape = 'u8[4096]{0}', space=vmem, size = 0x1000, scoped, tag = 'output window, operand 0, single buffered']
    %8 = vsyncpa [#allocation4], 0
    %9 = vsyncpa [#allocation7], 0
    %10 = vsyncpa [#allocation5], 0
    // Predicated region
    $region2: #{tpu_custom_call.1} parent=1 // pred_check
      _
    $region3: #{tpu_custom_call.1} parent=1 // pred_check_branch
      %12 = sbr.rel (0) target = $region5
    $region4: #{tpu_custom_call.1} parent=1 // pred_region
      %s14 = ssub.s32 128, 128
      %15 = vsyncadd [#allocation4], %s14
      %s16 = sshll.u32 [#allocation3], 4
      %s17 = int_to_ptr.vmem [resolvable:$true] %s16
      %22 = dma.hbm_to_vmem [thread:$0]  %s0, 128, %s17, [#allocation4], 64, 64, 4
    $region5: #{tpu_custom_call.1} parent=1 // pred_fallthru
      _
    // Predicated region
    $region6: #{tpu_custom_call.1} parent=1 // pred_check
      _
    $region7: #{tpu_custom_call.1} parent=1 // pred_check_branch
      %24 = sbr.rel (0) target = $region9
    $region8: #{tpu_custom_call.1} parent=1 // pred_region
      %s26 = ssub.s32 1024, 1024
      %27 = vsyncadd [#allocation7], %s26
      %s28 = sshll.u32 [#allocation6], 4
      %s29 = int_to_ptr.vmem [resolvable:$true] %s28
      %34 = dma.hbm_to_vmem [thread:$0]  %s1, 1024, %s29, [#allocation7], 64, 64, 4
    $region9: #{tpu_custom_call.1} parent=1 // pred_fallthru
      _
    // Predicated region
    $region10: #{tpu_custom_call.1} parent=1 // pred_check
      _
    $region11: #{tpu_custom_call.1} parent=1 // pred_check_branch
      %36 = sbr.rel (0) target = $region13
    $region12: #{tpu_custom_call.1} parent=1 // pred_region
      _
    $region13: #{tpu_custom_call.1} parent=1 // pred_fallthru
      _
    // Predicated region
    $region14: #{tpu_custom_call.1} parent=1 // pred_check
      _
    $region15: #{tpu_custom_call.1} parent=1 // pred_check_branch
      %38 = sbr.rel (0) target = $region17
    $region16: #{tpu_custom_call.1} parent=1 // pred_region
      %39 = dma.done [#allocation4], 128
    $region17: #{tpu_custom_call.1} parent=1 // pred_fallthru
      _
    // Predicated region
    $region18: #{tpu_custom_call.1} parent=1 // pred_check
      _
    $region19: #{tpu_custom_call.1} parent=1 // pred_check_branch
      %41 = sbr.rel (0) target = $region21
    $region20: #{tpu_custom_call.1} parent=1 // pred_region
      %42 = dma.done [#allocation7], 1024
    $region21: #{tpu_custom_call.1} parent=1 // pred_fallthru
      _
    %p44 = scmp.eq.s32.totalorder 0, 0
    // Predicated region
    $region22: #{tpu_custom_call.1} parent=1 // pred_check
      %p45 = pneg %p44
    $region23: #{tpu_custom_call.1} parent=1 // pred_check_branch
      %47 = sbr.rel (%p45) target = $region25
    $region24: #{tpu_custom_call.1} parent=1 // pred_region
      %48 = vst [vmem:[#allocation2] sm:$0xff] 0.0
      %49 = vst [vmem:[#allocation2 + $0x8] sm:$0xff] 0.0
    $region25: #{tpu_custom_call.1} parent=1 // pred_fallthru
      _
    %v50 = vld [vmem:[#allocation2] sm:$0xff]
    %v51 = vld [vmem:[#allocation2 + $0x8] sm:$0xff]
    %v52 = vld [vmem:[#allocation3] sm:$0xf]
    %v53 = vld [vmem:[#allocation3 + $0x4] sm:$0xf]
    %v54 = vld [vmem:[#allocation6] sm:$0xf]
    %v55 = vld [vmem:[#allocation6 + $0x4] sm:$0xf]
    %v56 = vld [vmem:[#allocation6 + $0x8] sm:$0xf]
    %v57 = vld [vmem:[#allocation6 + $0xc] sm:$0xf]
    %v58 = vld [vmem:[#allocation6 + $0x10] sm:$0xf]
    %v59 = vld [vmem:[#allocation6 + $0x14] sm:$0xf]
    %v60 = vld [vmem:[#allocation6 + $0x18] sm:$0xf]
    %v61 = vld [vmem:[#allocation6 + $0x1c] sm:$0xf]
    %v62 = vld [vmem:[#allocation6 + $0x20] sm:$0xf]
    %v63 = vld [vmem:[#allocation6 + $0x24] sm:$0xf]
    %v64 = vld [vmem:[#allocation6 + $0x28] sm:$0xf]
    %v65 = vld [vmem:[#allocation6 + $0x2c] sm:$0xf]
    %v66 = vld [vmem:[#allocation6 + $0x30] sm:$0xf]
    %v67 = vld [vmem:[#allocation6 + $0x34] sm:$0xf]
    %v68 = vld [vmem:[#allocation6 + $0x38] sm:$0xf]
    %v69 = vld [vmem:[#allocation6 + $0x3c] sm:$0xf]
    %v72 = vunpack.c.l.b16 %v52
    %v73 = vunpack.c.l.b16 %v53
    %v74 = vpack.c.b16 %v73, %v72
    %v92 = vunpack.c.l.b16 %v54
    %v93 = vunpack.c.l.b16 %v55
    %v94 = vunpack.c.l.b16 %v56
    %v95 = vunpack.c.l.b16 %v57
    %v96 = vunpack.c.l.b16 %v58
    %v97 = vunpack.c.l.b16 %v59
    %v98 = vunpack.c.l.b16 %v60
    %v99 = vunpack.c.l.b16 %v61
    %v100 = vunpack.c.l.b16 %v62
    %v101 = vunpack.c.l.b16 %v63
    %v102 = vunpack.c.l.b16 %v64
    %v103 = vunpack.c.l.b16 %v65
    %v104 = vunpack.c.l.b16 %v66
    %v105 = vunpack.c.l.b16 %v67
    %v106 = vunpack.c.l.b16 %v68
    %v107 = vunpack.c.l.b16 %v69
    %v108 = vpack.c.b16 %v93, %v92
    %v109 = vpack.c.b16 %v95, %v94
    %v110 = vpack.c.b16 %v97, %v96
    %v111 = vpack.c.b16 %v99, %v98
    %v112 = vpack.c.b16 %v101, %v100
    %v113 = vpack.c.b16 %v103, %v102
    %v114 = vpack.c.b16 %v105, %v104
    %v115 = vpack.c.b16 %v107, %v106
    %124 = vmatprep.subr.bf16.mxu0 0
    %125 = vmatpush1.bf16.msra.mxu0 %v108
    %126 = vmatprep.subr.bf16.mxu0 0
    %127 = vmatpush1.bf16.msra.mxu0 %v109
    %128 = vmatprep.subr.bf16.mxu0 0
    %129 = vmatpush1.bf16.msra.mxu0 %v110
    %130 = vmatprep.subr.bf16.mxu0 0
    %131 = vmatpush1.bf16.msra.mxu0 %v111
    %132 = vmatprep.subr.bf16.mxu0 0
    %133 = vmatpush1.bf16.msra.mxu0 %v112
    %134 = vmatprep.subr.bf16.mxu0 0
    %135 = vmatpush1.bf16.msra.mxu0 %v113
    %136 = vmatprep.subr.bf16.mxu0 0
    %137 = vmatpush1.bf16.msra.mxu0 %v114
    %138 = vmatprep.subr.bf16.mxu0 0
    %139 = vmatpush1.bf16.msra.mxu0 %v115
    %140 = vmatprep.subr.bf16.mxu0 0
    %141 = vmatpush1.bf16.msra.mxu0 0
    %142 = vmatprep.subr.bf16.mxu0 0
    %143 = vmatpush1.bf16.msra.mxu0 0
    %144 = vmatprep.subr.bf16.mxu0 0
    %145 = vmatpush1.bf16.msra.mxu0 0
    %146 = vmatprep.subr.bf16.mxu0 0
    %147 = vmatpush1.bf16.msra.mxu0 0
    %148 = vmatprep.subr.bf16.mxu0 0
    %149 = vmatpush1.bf16.msra.mxu0 0
    %150 = vmatprep.subr.bf16.mxu0 0
    %151 = vmatpush1.bf16.msra.mxu0 0
    %152 = vmatprep.subr.bf16.mxu0 0
    %153 = vmatpush1.bf16.msra.mxu0 0
    %154 = vmatprep.subr.bf16.mxu0 0
    %155 = vmatpush1.bf16.msra.mxu0 0
    %156 = vmatprep.mubr.bf16.mxu0 0
    %157 = vmatmul.mubr.bf16.gmra.mrb[0].mxu0 %v74
    %v158 = vpop.f32.mrb[0].mxu0
    %v159 = vadd.f32 0.0, %v158
    %v160 = vpop.f32.mrb[0].mxu0
    %v161 = vpop.f32.mrb[0].mxu0
    %v162 = vadd.f32 0.0, %v161
    %v163 = vpop.f32.mrb[0].mxu0
    %164 = vdwg.mxu0
    %v165 = vadd.f32 %v50, %v159
    %v166 = vadd.f32 %v51, %v162
    %167 = vst [vmem:[#allocation2] sm:$0xff] %v165
    %168 = vst [vmem:[#allocation2 + $0x8] sm:$0xff] %v166
    // Predicated region
    $region26: #{tpu_custom_call.1} parent=1 // pred_check
      %p169 = pneg %p44
    $region27: #{tpu_custom_call.1} parent=1 // pred_check_branch
      %171 = sbr.rel (%p169) target = $region29
    $region28: #{tpu_custom_call.1} parent=1 // pred_region
      %v172 = vld [vmem:[#allocation2] sm:$0xff]
      %v173 = vld [vmem:[#allocation2 + $0x8] sm:$0xff]
      %v174 = vld [vmem:[%s2] sm:$0x1]
      %v176 = vlaneseq
      %v177 = vshrl.u32 %v176, 7
      %v178 = vsub.s32 0, %v177
      %v179 = vrot.slane %v174, %v178
      %v181 = vadd.f32 %v172, %v179
      %v182 = vadd.f32 %v173, %v179
      %v183 = vmax.f32 %v181, 0.0
      %v184 = vmax.f32 %v182, 0.0
      %v185 = vpack.c.bf16 %v184, %v183
      %v187 = vunpack.c.l.b16 %v185
      %v188 = vunpack.c.h.b16 %v185
      %v189 = vpack.c.b16 %v187, %v187
      %v190 = vpack.c.b16 %v188, %v188
      %193 = vst [vmem:[#allocation8] sm:$0xf] %v189
      %194 = vst [vmem:[#allocation8 + $0x4] sm:$0xf] %v190
    $region29: #{tpu_custom_call.1} parent=1 // pred_fallthru
      _
    // Predicated region
    $region30: #{tpu_custom_call.1} parent=1 // pred_check
      _
    $region31: #{tpu_custom_call.1} parent=1 // pred_check_branch
      %196 = sbr.rel (0) target = $region33
    $region32: #{tpu_custom_call.1} parent=1 // pred_region
      %s198 = ssub.s32 128, 128
      %199 = vsyncadd [#allocation5], %s198
      %s200 = sshll.u32 [#allocation8], 4
      %s201 = int_to_ptr.vmem [resolvable:$true] %s200
      %206 = dma.vmem_to_hbm [thread:$0]  %s201, 128, %s3, [#allocation5], 64, 64, 4
    $region33: #{tpu_custom_call.1} parent=1 // pred_fallthru
      _
    // Predicated region
    $region34: #{tpu_custom_call.1} parent=1 // pred_check
      _
    $region35: #{tpu_custom_call.1} parent=1 // pred_check_branch
      %208 = sbr.rel (0) target = $region37
    $region36: #{tpu_custom_call.1} parent=1 // pred_region
      %209 = dma.done [#allocation5], 128
    $region37: #{tpu_custom_call.1} parent=1 // pred_fallthru
      _
    %210 = vsyncpa [#allocation4], 1
    %211 = vsyncpa [#allocation7], 1
    %212 = vsyncpa [#allocation5], 1

</llo_original>
